<compile_context>
chip_gen: v7x
topology: tpu7x:2x2x1
jax: 0.10.0
libtpu: 0.0.40
codegen_flags: <defaults>
</compile_context>

<pallas_src>
import functools
import math

import numpy as np
import jax
import jax.numpy as jnp
from jax.experimental import pallas as pl
from jax.experimental.pallas import tpu as pltpu


def _round_up(n, m):
    return ((n + m - 1) // m) * m


def _lcm(a, b):
    return a * b // math.gcd(a, b)


def _make_diff_matrix(nclass, sm):
    """(nclass*(sm-1), nclass*sm) numpy matrix D with
    temp @ D == [t0, t1-t0, ..., t_{k-1}-t_{k-2}, t_{k-1}] per class block."""
    k = sm - 1
    d = np.zeros((nclass * k, nclass * sm), dtype=np.float32)
    for i in range(nclass):
        r0, c0 = i * k, i * sm
        d[r0, c0] = 1.0                                   # first cumulative prob
        for j in range(1, k):
            d[r0 + j, c0 + j] = 1.0                       # adjacent differences
            d[r0 + j - 1, c0 + j] = -1.0
        d[r0 + k - 1, c0 + sm - 1] = 1.0                  # last cumulative prob
    return d


def _ornet_kernel(x_ref, wt_ref, b_ref, d_ref, o_ref, *, mm_dtype):
    # First matmul on the MXU: (tbr, pack*F) @ (pack*F, pack*nk), f32 accumulate.
    x = x_ref[...].astype(mm_dtype)                       # cast only the dot operand
    z = jnp.dot(x, wt_ref[...], preferred_element_type=jnp.float32)
    temp = jax.nn.sigmoid(z + b_ref[...])                 # f32 bias add + EUP sigmoid
    # Difference matmul kept in f32 (small adjacent sigmoid diffs).
    out = jnp.dot(temp, d_ref[...], preferred_element_type=jnp.float32)
    o_ref[...] = out.astype(o_ref.dtype)                  # full-width lane-dense store


def _tile_bytes(rows, cols, itemsize):
    # Lane-padding-aware VMEM footprint of one buffer of a (rows, cols) tile.
    return _round_up(rows, 8) * _round_up(cols, 128) * itemsize


def ornet_forward(x, w, or_bias, *, nclass, sm, block_b=16384, matmul_dtype=None):
    B, F = x.shape
    k = sm - 1
    nk = nclass * k
    out_dim = nclass * sm

    if matmul_dtype is None:
        matmul_dtype = jnp.bfloat16 if jax.default_backend() == "tpu" else jnp.float32
    mm_dtype = jnp.dtype(matmul_dtype)
    x_itemsize = jnp.dtype(x.dtype).itemsize

    # Lane-dense pack factor: fold `pack` batch rows into one super-row so that both
    # pack*out_dim and pack*F are multiples of 128 (pack <= 128).  For F=32, out_dim=20
    # this gives pack=32: x tiles (tbr,1024), out tiles (tbr,640).
    pack = _lcm(128, out_dim) // out_dim
    pack = _lcm(pack, _lcm(128, F) // F)

    xin_cols = pack * F
    mid_cols = pack * nk
    o_cols = pack * out_dim

    # Wrapper-side prep (tiny, done once per call): expanded weight / bias / diff matrix,
    # block-diagonally replicated `pack` times.
    w_exp_t = jnp.repeat(w, k, axis=0).T                                  # (F, nk)
    w_packed = jnp.kron(jnp.eye(pack, dtype=w_exp_t.dtype), w_exp_t).astype(mm_dtype)
    b_packed = jnp.tile(or_bias.reshape(1, nk).astype(jnp.float32), (1, pack))
    d_packed = jnp.asarray(
        np.kron(np.eye(pack, dtype=np.float32), _make_diff_matrix(nclass, sm)))

    # Tile sizing: big tile to amortize per-step overhead, capped so the grid has >=2
    # steps (v7x megacore) and so the lane-padded, double-buffered footprint fits VMEM.
    rows = -(-B // pack)                                   # super-rows needed
    block_rows = max(1, block_b // pack)
    tbr = max(8, min(_round_up(block_rows, 8), _round_up(-(-rows // 2), 8)))

    def footprint(t):
        stream = 2 * (_tile_bytes(t, xin_cols, x_itemsize) + _tile_bytes(t, o_cols, 4))
        resident = 2 * (_tile_bytes(xin_cols, mid_cols, mm_dtype.itemsize)
                        + _tile_bytes(1, mid_cols, 4)
                        + _tile_bytes(mid_cols, o_cols, 4))
        return stream + resident

    VMEM_BUDGET = 32 << 20                                 # safe on v5e/v6e/v7x
    while tbr > 8 and footprint(tbr) > VMEM_BUDGET:
        tbr = max(8, _round_up(tbr // 2, 8))

    rows_p = _round_up(rows, tbr)
    Bp = rows_p * pack
    if Bp != B:
        # NOTE: this materializes one extra HBM copy of x; pick B % (pack*tbr) == 0 in
        # production to skip it entirely.
        x = jnp.pad(x, ((0, Bp - B), (0, 0)))
    x_packed = x.reshape(rows_p, xin_cols)                 # contiguous reshape: free
    grid = (rows_p // tbr,)

    vmem_limit = int(min(64 << 20, max(16 << 20, footprint(tbr) + (8 << 20))))

    cost = pl.CostEstimate(
        flops=2 * rows_p * xin_cols * mid_cols + 2 * rows_p * mid_cols * o_cols,
        transcendentals=rows_p * mid_cols,
        bytes_accessed=(rows_p * xin_cols * x_itemsize + rows_p * o_cols * 4
                        + xin_cols * mid_cols * mm_dtype.itemsize
                        + mid_cols * 4 + mid_cols * o_cols * 4),
    )

    out = pl.pallas_call(
        functools.partial(_ornet_kernel, mm_dtype=mm_dtype),
        out_shape=jax.ShapeDtypeStruct((rows_p, o_cols), jnp.float32),
        grid_spec=pltpu.PrefetchScalarGridSpec(
            num_scalar_prefetch=0,
            grid=grid,
            in_specs=[
                pl.BlockSpec((tbr, xin_cols), lambda i: (i, 0)),      # x: streamed over batch
                pl.BlockSpec((xin_cols, mid_cols), lambda i: (0, 0)), # W_packed: resident
                pl.BlockSpec((1, mid_cols), lambda i: (0, 0)),        # bias: resident
                pl.BlockSpec((mid_cols, o_cols), lambda i: (0, 0)),   # D: resident
            ],
            out_specs=pl.BlockSpec((tbr, o_cols), lambda i: (i, 0)),
        ),
        compiler_params=pltpu.CompilerParams(
            dimension_semantics=("parallel",),
            vmem_limit_bytes=vmem_limit,
        ),
        cost_estimate=cost,
    )(x_packed, w_packed, b_packed, d_packed)

    return out.reshape(Bp, out_dim)[:B]


def ornet_reference(x, w, or_bias, *, nclass, sm):
    """Pure-JAX reference mirroring the PyTorch forward exactly."""
    z = x @ w.T                                                  # (B, nclass)
    temp = jax.nn.sigmoid(or_bias[None, :, :] + z[:, :, None])   # (B, nclass, sm-1)
    first = temp[:, :, 0:1]
    diffs = temp[:, :, 1:] - temp[:, :, :-1]
    last = temp[:, :, sm - 2 : sm - 1]
    out = jnp.concatenate([first, diffs, last], axis=-1)         # (B, nclass, sm)
    return out.reshape(x.shape[0], nclass * sm)


if __name__ == "__main__":
    # Small deterministic setup consistent with ORNet(in_features, nclass, sm).
    in_features, nclass, sm = 32, 4, 5
    batch = 8

    key = jax.random.PRNGKey(0)
    kx, kw, kb = jax.random.split(key, 3)

    x = jax.random.normal(kx, (batch, in_features), dtype=jnp.float32)
    # nn.Linear(in_features, nclass, bias=False) weight: (nclass, in_features)
    w = jax.random.normal(kw, (nclass, in_features), dtype=jnp.float32) * (
        1.0 / jnp.sqrt(in_features)
    )
    # or_bias = sorted randn(nclass, sm-1) along dim 1
    or_bias = jnp.sort(jax.random.normal(kb, (nclass, sm - 1), dtype=jnp.float32), axis=1)

    ref = ornet_reference(x, w, or_bias, nclass=nclass, sm=sm)

    # Exact-precision path (f32 MXU operands): matches reference tightly.
    out_f32 = jax.block_until_ready(
        ornet_forward(x, w, or_bias, nclass=nclass, sm=sm, matmul_dtype=jnp.float32))
    assert out_f32.shape == (batch, nclass * sm), out_f32.shape
    assert jnp.allclose(out_f32, ref, atol=1e-5, rtol=1e-5), "f32 path mismatch vs reference"

    # Default (perf) path: bf16 MXU operands on TPU, f32 everywhere else in the pipeline.
    out_def = jax.block_until_ready(ornet_forward(x, w, or_bias, nclass=nclass, sm=sm))
    assert out_def.shape == (batch, nclass * sm), out_def.shape
    assert jnp.allclose(out_def, ref, atol=2e-2, rtol=2e-2), "default path mismatch vs reference"

    print("KERNEL_OK")
</pallas_src>

<mosaic_0001>
module attributes {stable_mosaic.version = 11 : i64} {
  func.func @_ornet_kernel(%arg0: i32, %arg1: memref<8x1024xf32, #tpu.memory_space<vmem>>, %arg2: memref<1024x512xf32, #tpu.memory_space<vmem>>, %arg3: memref<1x512xf32, #tpu.memory_space<vmem>>, %arg4: memref<512x640xf32, #tpu.memory_space<vmem>>, %arg5: memref<8x640xf32, #tpu.memory_space<vmem>>) attributes {dimension_semantics = [#tpu.dimension_semantics<parallel>], iteration_bounds = array<i64: 1>, scalar_prefetch = 0 : i64, scratch_operands = 0 : i64, tpu.core_type = #tpu.core_type<tc>, window_params = [{transform_indices = @transform_0, window_bounds = array<i64: 8, 1024>}, {pipeline_mode = #tpu.pipeline_mode<synchronous>, transform_indices = @transform_1, window_bounds = array<i64: 1024, 512>}, {pipeline_mode = #tpu.pipeline_mode<synchronous>, transform_indices = @transform_2, window_bounds = array<i64: 1, 512>}, {pipeline_mode = #tpu.pipeline_mode<synchronous>, transform_indices = @transform_3, window_bounds = array<i64: 512, 640>}, {transform_indices = @transform_4, window_bounds = array<i64: 8, 640>}]} {
    %c0 = arith.constant 0 : index
    %c0_0 = arith.constant 0 : index
    %0 = vector.load %arg1[%c0, %c0_0] : memref<8x1024xf32, #tpu.memory_space<vmem>>, vector<8x1024xf32>
    %c0_1 = arith.constant 0 : index
    %c0_2 = arith.constant 0 : index
    %1 = vector.load %arg2[%c0_1, %c0_2] : memref<1024x512xf32, #tpu.memory_space<vmem>>, vector<1024x512xf32>
    %cst = arith.constant dense<0.000000e+00> : vector<8x512xf32>
    %2 = tpu.matmul %0, %1, %cst {dimension_numbers = #tpu.dot_dimension_numbers<[1], [0], [0], [1], [0, 0, 1, 1], [], []>} : vector<8x1024xf32>, vector<1024x512xf32>, vector<8x512xf32> -> vector<8x512xf32>
    %c0_3 = arith.constant 0 : index
    %c0_4 = arith.constant 0 : index
    %3 = vector.load %arg3[%c0_3, %c0_4] : memref<1x512xf32, #tpu.memory_space<vmem>>, vector<1x512xf32>
    %4 = vector.broadcast %3 : vector<1x512xf32> to vector<8x512xf32>
    %5 = arith.addf %2, %4 : vector<8x512xf32>
    %6 = arith.negf %5 : vector<8x512xf32>
    %7 = math.exp %6 : vector<8x512xf32>
    %cst_5 = arith.constant 1.000000e+00 : f32
    %8 = vector.broadcast %cst_5 : f32 to vector<8x512xf32>
    %9 = arith.addf %8, %7 : vector<8x512xf32>
    %10 = arith.divf %8, %9 : vector<8x512xf32>
    %c0_6 = arith.constant 0 : index
    %c0_7 = arith.constant 0 : index
    %11 = vector.load %arg4[%c0_6, %c0_7] : memref<512x640xf32, #tpu.memory_space<vmem>>, vector<512x640xf32>
    %cst_8 = arith.constant dense<0.000000e+00> : vector<8x640xf32>
    %12 = tpu.matmul %10, %11, %cst_8 {dimension_numbers = #tpu.dot_dimension_numbers<[1], [0], [0], [1], [0, 0, 1, 1], [], []>} : vector<8x512xf32>, vector<512x640xf32>, vector<8x640xf32> -> vector<8x640xf32>
    %c0_9 = arith.constant 0 : index
    %c0_10 = arith.constant 0 : index
    %13 = vector.load %arg5[%c0_9, %c0_10] : memref<8x640xf32, #tpu.memory_space<vmem>>, vector<8x640xf32>
    tpu.vector_store %arg5[%c0_9, %c0_10], %12 {strides = array<i32>} : memref<8x640xf32, #tpu.memory_space<vmem>>, vector<8x640xf32>,
    return
  }
  func.func @transform_0(%arg0: i32) -> (i32, i32) {
    %c0_i32 = arith.constant 0 : i32
    %c0_i32_0 = arith.constant 0 : i32
    return %arg0, %c0_i32 : i32, i32
  }
  func.func @transform_1(%arg0: i32) -> (i32, i32) {
    %c0_i32 = arith.constant 0 : i32
    %c0_i32_0 = arith.constant 0 : i32
    %c0_i32_1 = arith.constant 0 : i32
    return %c0_i32, %c0_i32_0 : i32, i32
  }
  func.func @transform_2(%arg0: i32) -> (i32, i32) {
    %c0_i32 = arith.constant 0 : i32
    %c0_i32_0 = arith.constant 0 : i32
    %c0_i32_1 = arith.constant 0 : i32
    return %c0_i32, %c0_i32_0 : i32, i32
  }
  func.func @transform_3(%arg0: i32) -> (i32, i32) {
    %c0_i32 = arith.constant 0 : i32
    %c0_i32_0 = arith.constant 0 : i32
    %c0_i32_1 = arith.constant 0 : i32
    return %c0_i32, %c0_i32_0 : i32, i32
  }
  func.func @transform_4(%arg0: i32) -> (i32, i32) {
    %c0_i32 = arith.constant 0 : i32
    %c0_i32_0 = arith.constant 0 : i32
    return %arg0, %c0_i32 : i32, i32
  }
}

</mosaic_0001>

<llo_original>
// kernel: tpu_custom_call.1
$region0: #{tpu_custom_call.1}
  #allocation0 [shape = 'u32[]', space=smem, size = 0x4, offset = 0x4, fixed_abs, tag = 'smem constant byte address 0x4 - core index']
  #allocation1 [shape = 'u32[144,128]{1,0:T(1,128)}', space=vmem, size = 0x12000, scoped, tag = 'internal scratch']
  %s0 = inlined_call_operand.hbm [shape: f32[8,1024], index: 0, kind: input, shape index: {}]
  %s1 = inlined_call_operand.hbm [shape: f32[1024,512], index: 1, kind: input, shape index: {}]
  %s2 = inlined_call_operand.hbm [shape: f32[1,512], index: 2, kind: input, shape index: {}]
  %s3 = inlined_call_operand.hbm [shape: f32[512,640], index: 3, kind: input, shape index: {}]
  %s4 = inlined_call_operand.hbm [shape: f32[8,640], index: 4, kind: output, shape index: {}]
  %s5 = sld [smem:[#allocation0]]
  $region42: #{tpu_custom_call.1} parent=0
    _
  %s7 = ssub.s32 1, %s5
  %s8 = scalar_select 0, %s7, %s5
  $region1: #{tpu_custom_call.1} parent=0
    #allocation2 [shape = 'u8[32768]{0}', space=vmem, size = 0x8000, scoped, tag = 'input window, operand 0, single buffered']
    #allocation3 [shape = 's32[1]{0}', space=sflag, size = 0x4, scoped, tag = 'scoped memory for tpu_custom_call.1']
    #allocation4 [shape = 's32[1]{0}', space=sflag, size = 0x4, scoped, tag = 'scoped memory for tpu_custom_call.1']
    #allocation5 [shape = 'u8[2097152]{0}', space=vmem, size = 0x200000, scoped, tag = 'input window, operand 1, single buffered']
    #allocation6 [shape = 's32[1]{0}', space=sflag, size = 0x4, scoped, tag = 'scoped memory for tpu_custom_call.1']
    #allocation7 [shape = 'u8[2048]{0}', space=vmem, size = 0x800, scoped, tag = 'input window, operand 2, single buffered']
    #allocation8 [shape = 'u8[1310720]{0}', space=vmem, size = 0x140000, scoped, tag = 'input window, operand 3, single buffered']
    #allocation9 [shape = 's32[1]{0}', space=sflag, size = 0x4, scoped, tag = 'scoped memory for tpu_custom_call.1']
    #allocation10 [shape = 'u8[20480]{0}', space=vmem, size = 0x5000, scoped, tag = 'output window, operand 0, single buffered']
    %9 = vsyncpa [#allocation3], 0
    %10 = vsyncpa [#allocation6], 0
    %11 = vsyncpa [#allocation9], 0
    %12 = vsyncpa [#allocation4], 0
    // Predicated region
    $region2: #{tpu_custom_call.1} parent=1 // pred_check
      _
    $region3: #{tpu_custom_call.1} parent=1 // pred_check_branch
      %14 = sbr.rel (0) target = $region5
    $region4: #{tpu_custom_call.1} parent=1 // pred_region
      %s16 = ssub.s32 1024, 1024
      %17 = vsyncadd [#allocation3], %s16
      %s19 = sshll.u32 [#allocation2], 4
      %s20 = int_to_ptr.vmem [resolvable:$true] %s19
      %22 = dma.hbm_to_vmem [thread:$0]  %s0, 1024, %s20, [#allocation3]
    $region5: #{tpu_custom_call.1} parent=1 // pred_fallthru
      _
    // Predicated region
    $region6: #{tpu_custom_call.1} parent=1 // pred_check
      _
    $region7: #{tpu_custom_call.1} parent=1 // pred_check_branch
      %24 = sbr.rel (0) target = $region9
    $region8: #{tpu_custom_call.1} parent=1 // pred_region
      %s26 = ssub.s32 65536, 65536
      %27 = vsyncadd [#allocation6], %s26
      %s28 = sshll.u32 [#allocation5], 4
      %s29 = int_to_ptr.vmem [resolvable:$true] %s28
      %34 = dma.hbm_to_vmem [thread:$0]  %s1, 65536, %s29, [#allocation6], 512, 512, 32
    $region9: #{tpu_custom_call.1} parent=1 // pred_fallthru
      _
    // Predicated region
    $region10: #{tpu_custom_call.1} parent=1 // pred_check
      _
    $region11: #{tpu_custom_call.1} parent=1 // pred_check_branch
      %36 = sbr.rel (0) target = $region13
    $region12: #{tpu_custom_call.1} parent=1 // pred_region
      %s38 = ssub.s32 64, 64
      %39 = vsyncadd [#allocation6], %s38
      %s41 = sshll.u32 [#allocation7], 4
      %s42 = int_to_ptr.vmem [resolvable:$true] %s41
      %44 = dma.hbm_to_vmem [thread:$0]  %s2, 64, %s42, [#allocation6]
    $region13: #{tpu_custom_call.1} parent=1 // pred_fallthru
      _
    // Predicated region
    $region14: #{tpu_custom_call.1} parent=1 // pred_check
      _
    $region15: #{tpu_custom_call.1} parent=1 // pred_check_branch
      %46 = sbr.rel (0) target = $region17
    $region16: #{tpu_custom_call.1} parent=1 // pred_region
      %s48 = ssub.s32 40960, 40960
      %49 = vsyncadd [#allocation9], %s48
      %s50 = sshll.u32 [#allocation8], 4
      %s51 = int_to_ptr.vmem [resolvable:$true] %s50
      %56 = dma.hbm_to_vmem [thread:$0]  %s3, 40960, %s51, [#allocation9], 640, 640, 40
    $region17: #{tpu_custom_call.1} parent=1 // pred_fallthru
      _
    // Predicated region
    $region18: #{tpu_custom_call.1} parent=1 // pred_check
      _
    $region19: #{tpu_custom_call.1} parent=1 // pred_check_branch
      %58 = sbr.rel (0) target = $region21
    $region20: #{tpu_custom_call.1} parent=1 // pred_region
      %59 = dma.done [#allocation3], 1024
    $region21: #{tpu_custom_call.1} parent=1 // pred_fallthru
      _
    // Predicated region
    $region22: #{tpu_custom_call.1} parent=1 // pred_check
      _
    $region23: #{tpu_custom_call.1} parent=1 // pred_check_branch
      %61 = sbr.rel (0) target = $region25
    $region24: #{tpu_custom_call.1} parent=1 // pred_region
      %62 = dma.done [#allocation6], 65536
    $region25: #{tpu_custom_call.1} parent=1 // pred_fallthru
      _
    // Predicated region
    $region26: #{tpu_custom_call.1} parent=1 // pred_check
      _
    $region27: #{tpu_custom_call.1} parent=1 // pred_check_branch
      %64 = sbr.rel (0) target = $region29
    $region28: #{tpu_custom_call.1} parent=1 // pred_region
      %65 = dma.done [#allocation6], 64
    $region29: #{tpu_custom_call.1} parent=1 // pred_fallthru
      _
    // Predicated region
    $region30: #{tpu_custom_call.1} parent=1 // pred_check
      _
    $region31: #{tpu_custom_call.1} parent=1 // pred_check_branch
      %67 = sbr.rel (0) target = $region33
    $region32: #{tpu_custom_call.1} parent=1 // pred_region
      %68 = dma.done [#allocation9], 40960
    $region33: #{tpu_custom_call.1} parent=1 // pred_fallthru
      _
    %v69 = vld [vmem:[#allocation2] sm:$0xff]
    %v70 = vld [vmem:[#allocation2 + $0x8] sm:$0xff]
    %v71 = vld [vmem:[#allocation2 + $0x10] sm:$0xff]
    %v72 = vld [vmem:[#allocation2 + $0x18] sm:$0xff]
    %v73 = vld [vmem:[#allocation2 + $0x20] sm:$0xff]
    %v74 = vld [vmem:[#allocation2 + $0x28] sm:$0xff]
    %v75 = vld [vmem:[#allocation2 + $0x30] sm:$0xff]
    %v76 = vld [vmem:[#allocation2 + $0x38] sm:$0xff]
    %v77 = vld [vmem:[#allocation5] sm:$0xff]
    %v78 = vld [vmem:[#allocation5 + $0x8] sm:$0xff]
    %v79 = vld [vmem:[#allocation5 + $0x10] sm:$0xff]
    %v80 = vld [vmem:[#allocation5 + $0x18] sm:$0xff]
    %v81 = vld [vmem:[#allocation5 + $0x20] sm:$0xff]
    %v82 = vld [vmem:[#allocation5 + $0x28] sm:$0xff]
    %v83 = vld [vmem:[#allocation5 + $0x30] sm:$0xff]
    %v84 = vld [vmem:[#allocation5 + $0x38] sm:$0xff]
    %v85 = vld [vmem:[#allocation5 + $0x40] sm:$0xff]
    %v86 = vld [vmem:[#allocation5 + $0x48] sm:$0xff]
    %v87 = vld [vmem:[#allocation5 + $0x50] sm:$0xff]
    %v88 = vld [vmem:[#allocation5 + $0x58] sm:$0xff]
    %v89 = vld [vmem:[#allocation5 + $0x60] sm:$0xff]
    %v90 = vld [vmem:[#allocation5 + $0x68] sm:$0xff]
    %v91 = vld [vmem:[#allocation5 + $0x70] sm:$0xff]
    %v92 = vld [vmem:[#allocation5 + $0x78] sm:$0xff]
    %v93 = vld [vmem:[#allocation5 + $0x80] sm:$0xff]
    %v94 = vld [vmem:[#allocation5 + $0x88] sm:$0xff]
    %v95 = vld [vmem:[#allocation5 + $0x90] sm:$0xff]
    %v96 = vld [vmem:[#allocation5 + $0x98] sm:$0xff]
    %v97 = vld [vmem:[#allocation5 + $0xa0] sm:$0xff]
    %v98 = vld [vmem:[#allocation5 + $0xa8] sm:$0xff]
    %v99 = vld [vmem:[#allocation5 + $0xb0] sm:$0xff]
    %v100 = vld [vmem:[#allocation5 + $0xb8] sm:$0xff]
    %v101 = vld [vmem:[#allocation5 + $0xc0] sm:$0xff]
    %v102 = vld [vmem:[#allocation5 + $0xc8] sm:$0xff]
    %v103 = vld [vmem:[#allocation5 + $0xd0] sm:$0xff]
    %v104 = vld [vmem:[#allocation5 + $0xd8] sm:$0xff]
    %v105 = vld [vmem:[#allocation5 + $0xe0] sm:$0xff]
    %v106 = vld [vmem:[#allocation5 + $0xe8] sm:$0xff]
    %v107 = vld [vmem:[#allocation5 + $0xf0] sm:$0xff]
    %v108 = vld [vmem:[#allocation5 + $0xf8] sm:$0xff]
    %v109 = vld [vmem:[#allocation5 + $0x100] sm:$0xff]
    %v110 = vld [vmem:[#allocation5 + $0x108] sm:$0xff]
    %v111 = vld [vmem:[#allocation5 + $0x110] sm:$0xff]
    %v112 = vld [vmem:[#allocation5 + $0x118] sm:$0xff]
    %v113 = vld [vmem:[#allocation5 + $0x120] sm:$0xff]
    %v114 = vld [vmem:[#allocation5 + $0x128] sm:$0xff]
    %v115 = vld [vmem:[#allocation5 + $0x130] sm:$0xff]
    %v116 = vld [vmem:[#allocation5 + $0x138] sm:$0xff]
    %v117 = vld [vmem:[#allocation5 + $0x140] sm:$0xff]
    %v118 = vld [vmem:[#allocation5 + $0x148] sm:$0xff]
    %v119 = vld [vmem:[#allocation5 + $0x150] sm:$0xff]
    %v120 = vld [vmem:[#allocation5 + $0x158] sm:$0xff]
    %v121 = vld [vmem:[#allocation5 + $0x160] sm:$0xff]
    %v122 = vld [vmem:[#allocation5 + $0x168] sm:$0xff]
    %v123 = vld [vmem:[#allocation5 + $0x170] sm:$0xff]
    %v124 = vld [vmem:[#allocation5 + $0x178] sm:$0xff]
    %v125 = vld [vmem:[#allocation5 + $0x180] sm:$0xff]
    %v126 = vld [vmem:[#allocation5 + $0x188] sm:$0xff]
    %v127 = vld [vmem:[#allocation5 + $0x190] sm:$0xff]
    %v128 = vld [vmem:[#allocation5 + $0x198] sm:$0xff]
    %v129 = vld [vmem:[#allocation5 + $0x1a0] sm:$0xff]
    %v130 = vld [vmem:[#allocation5 + $0x1a8] sm:$0xff]
    %v131 = vld [vmem:[#allocation5 + $0x1b0] sm:$0xff]
    %v132 = vld [vmem:[#allocation5 + $0x1b8] sm:$0xff]
    %v133 = vld [vmem:[#allocation5 + $0x1c0] sm:$0xff]
    %v134 = vld [vmem:[#allocation5 + $0x1c8] sm:$0xff]
    %v135 = vld [vmem:[#allocation5 + $0x1d0] sm:$0xff]
    %v136 = vld [vmem:[#allocation5 + $0x1d8] sm:$0xff]
    %v137 = vld [vmem:[#allocation5 + $0x1e0] sm:$0xff]
    %v138 = vld [vmem:[#allocation5 + $0x1e8] sm:$0xff]
    %v139 = vld [vmem:[#allocation5 + $0x1f0] sm:$0xff]
    %v140 = vld [vmem:[#allocation5 + $0x1f8] sm:$0xff]
    %v141 = vld [vmem:[#allocation5 + $0x200] sm:$0xff]
    %v142 = vld [vmem:[#allocation5 + $0x208] sm:$0xff]
    %v143 = vld [vmem:[#allocation5 + $0x210] sm:$0xff]
    %v144 = vld [vmem:[#allocation5 + $0x218] sm:$0xff]
    %v145 = vld [vmem:[#allocation5 + $0x220] sm:$0xff]
    %v146 = vld [vmem:[#allocation5 + $0x228] sm:$0xff]
    %v147 = vld [vmem:[#allocation5 + $0x230] sm:$0xff]
    %v148 = vld [vmem:[#allocation5 + $0x238] sm:$0xff]
    %v149 = vld [vmem:[#allocation5 + $0x240] sm:$0xff]
    %v150 = vld [vmem:[#allocation5 + $0x248] sm:$0xff]
    %v151 = vld [vmem:[#allocation5 + $0x250] sm:$0xff]
    %v152 = vld [vmem:[#allocation5 + $0x258] sm:$0xff]
    %v153 = vld [vmem:[#allocation5 + $0x260] sm:$0xff]
    %v154 = vld [vmem:[#allocation5 + $0x268] sm:$0xff]
    %v155 = vld [vmem:[#allocation5 + $0x270] sm:$0xff]
    %v156 = vld [vmem:[#allocation5 + $0x278] sm:$0xff]
    %v157 = vld [vmem:[#allocation5 + $0x280] sm:$0xff]
    %v158 = vld [vmem:[#allocation5 + $0x288] sm:$0xff]
    %v159 = vld [vmem:[#allocation5 + $0x290] sm:$0xff]
    %v160 = vld [vmem:[#allocation5 + $0x298] sm:$0xff]
    %v161 = vld [vmem:[#allocation5 + $0x2a0] sm:$0xff]
    %v162 = vld [vmem:[#allocation5 + $0x2a8] sm:$0xff]
    %v163 = vld [vmem:[#allocation5 + $0x2b0] sm:$0xff]
    %v164 = vld [vmem:[#allocation5 + $0x2b8] sm:$0xff]
    %v165 = vld [vmem:[#allocation5 + $0x2c0] sm:$0xff]
    %v166 = vld [vmem:[#allocation5 + $0x2c8] sm:$0xff]
    %v167 = vld [vmem:[#allocation5 + $0x2d0] sm:$0xff]
    %v168 = vld [vmem:[#allocation5 + $0x2d8] sm:$0xff]
    %v169 = vld [vmem:[#allocation5 + $0x2e0] sm:$0xff]
    %v170 = vld [vmem:[#allocation5 + $0x2e8] sm:$0xff]
    %v171 = vld [vmem:[#allocation5 + $0x2f0] sm:$0xff]
    %v172 = vld [vmem:[#allocation5 + $0x2f8] sm:$0xff]
    %v173 = vld [vmem:[#allocation5 + $0x300] sm:$0xff]
    %v174 = vld [vmem:[#allocation5 + $0x308] sm:$0xff]
    %v175 = vld [vmem:[#allocation5 + $0x310] sm:$0xff]
    %v176 = vld [vmem:[#allocation5 + $0x318] sm:$0xff]
    %v177 = vld [vmem:[#allocation5 + $0x320] sm:$0xff]
    %v178 = vld [vmem:[#allocation5 + $0x328] sm:$0xff]
    %v179 = vld [vmem:[#allocation5 + $0x330] sm:$0xff]
    %v180 = vld [vmem:[#allocation5 + $0x338] sm:$0xff]
    %v181 = vld [vmem:[#allocation5 + $0x340] sm:$0xff]
    %v182 = vld [vmem:[#allocation5 + $0x348] sm:$0xff]
    %v183 = vld [vmem:[#allocation5 + $0x350] sm:$0xff]
    %v184 = vld [vmem:[#allocation5 + $0x358] sm:$0xff]
    %v185 = vld [vmem:[#allocation5 + $0x360] sm:$0xff]
    %v186 = vld [vmem:[#allocation5 + $0x368] sm:$0xff]
    %v187 = vld [vmem:[#allocation5 + $0x370] sm:$0xff]
    %v188 = vld [vmem:[#allocation5 + $0x378] sm:$0xff]
    %v189 = vld [vmem:[#allocation5 + $0x380] sm:$0xff]
    %v190 = vld [vmem:[#allocation5 + $0x388] sm:$0xff]
    %v191 = vld [vmem:[#allocation5 + $0x390] sm:$0xff]
    %v192 = vld [vmem:[#allocation5 + $0x398] sm:$0xff]
    %v193 = vld [vmem:[#allocation5 + $0x3a0] sm:$0xff]
    %v194 = vld [vmem:[#allocation5 + $0x3a8] sm:$0xff]
    %v195 = vld [vmem:[#allocation5 + $0x3b0] sm:$0xff]
    %v196 = vld [vmem:[#allocation5 + $0x3b8] sm:$0xff]
    %v197 = vld [vmem:[#allocation5 + $0x3c0] sm:$0xff]
    %v198 = vld [vmem:[#allocation5 + $0x3c8] sm:$0xff]
    %v199 = vld [vmem:[#allocation5 + $0x3d0] sm:$0xff]
    %v200 = vld [vmem:[#allocation5 + $0x3d8] sm:$0xff]
    %v201 = vld [vmem:[#allocation5 + $0x3e0] sm:$0xff]
    %v202 = vld [vmem:[#allocation5 + $0x3e8] sm:$0xff]
    %v203 = vld [vmem:[#allocation5 + $0x3f0] sm:$0xff]
    %v204 = vld [vmem:[#allocation5 + $0x3f8] sm:$0xff]
    %v205 = vld [vmem:[#allocation5 + $0x400] sm:$0xff]
    %v206 = vld [vmem:[#allocation5 + $0x408] sm:$0xff]
    %v207 = vld [vmem:[#allocation5 + $0x410] sm:$0xff]
    %v208 = vld [vmem:[#allocation5 + $0x418] sm:$0xff]
    %v209 = vld [vmem:[#allocation5 + $0x420] sm:$0xff]
    %v210 = vld [vmem:[#allocation5 + $0x428] sm:$0xff]
    %v211 = vld [vmem:[#allocation5 + $0x430] sm:$0xff]
    %v212 = vld [vmem:[#allocation5 + $0x438] sm:$0xff]
    %v213 = vld [vmem:[#allocation5 + $0x440] sm:$0xff]
    %v214 = vld [vmem:[#allocation5 + $0x448] sm:$0xff]
    %v215 = vld [vmem:[#allocation5 + $0x450] sm:$0xff]
    %v216 = vld [vmem:[#allocation5 + $0x458] sm:$0xff]
    %v217 = vld [vmem:[#allocation5 + $0x460] sm:$0xff]
    %v218 = vld [vmem:[#allocation5 + $0x468] sm:$0xff]
    %v219 = vld [vmem:[#allocation5 + $0x470] sm:$0xff]
    %v220 = vld [vmem:[#allocation5 + $0x478] sm:$0xff]
    %v221 = vld [vmem:[#allocation5 + $0x480] sm:$0xff]
    %v222 = vld [vmem:[#allocation5 + $0x488] sm:$0xff]
    %v223 = vld [vmem:[#allocation5 + $0x490] sm:$0xff]
    %v224 = vld [vmem:[#allocation5 + $0x498] sm:$0xff]
    %v225 = vld [vmem:[#allocation5 + $0x4a0] sm:$0xff]
    %v226 = vld [vmem:[#allocation5 + $0x4a8] sm:$0xff]
    %v227 = vld [vmem:[#allocation5 + $0x4b0] sm:$0xff]
    %v228 = vld [vmem:[#allocation5 + $0x4b8] sm:$0xff]
    %v229 = vld [vmem:[#allocation5 + $0x4c0] sm:$0xff]
    %v230 = vld [vmem:[#allocation5 + $0x4c8] sm:$0xff]
    %v231 = vld [vmem:[#allocation5 + $0x4d0] sm:$0xff]
    %v232 = vld [vmem:[#allocation5 + $0x4d8] sm:$0xff]
    %v233 = vld [vmem:[#allocation5 + $0x4e0] sm:$0xff]
    %v234 = vld [vmem:[#allocation5 + $0x4e8] sm:$0xff]
    %v235 = vld [vmem:[#allocation5 + $0x4f0] sm:$0xff]
    %v236 = vld [vmem:[#allocation5 + $0x4f8] sm:$0xff]
    %v237 = vld [vmem:[#allocation5 + $0x500] sm:$0xff]
    %v238 = vld [vmem:[#allocation5 + $0x508] sm:$0xff]
    %v239 = vld [vmem:[#allocation5 + $0x510] sm:$0xff]
    %v240 = vld [vmem:[#allocation5 + $0x518] sm:$0xff]
    %v241 = vld [vmem:[#allocation5 + $0x520] sm:$0xff]
    %v242 = vld [vmem:[#allocation5 + $0x528] sm:$0xff]
    %v243 = vld [vmem:[#allocation5 + $0x530] sm:$0xff]
    %v244 = vld [vmem:[#allocation5 + $0x538] sm:$0xff]
    %v245 = vld [vmem:[#allocation5 + $0x540] sm:$0xff]
    %v246 = vld [vmem:[#allocation5 + $0x548] sm:$0xff]
    %v247 = vld [vmem:[#allocation5 + $0x550] sm:$0xff]
    %v248 = vld [vmem:[#allocation5 + $0x558] sm:$0xff]
    %v249 = vld [vmem:[#allocation5 + $0x560] sm:$0xff]
    %v250 = vld [vmem:[#allocation5 + $0x568] sm:$0xff]
    %v251 = vld [vmem:[#allocation5 + $0x570] sm:$0xff]
    %v252 = vld [vmem:[#allocation5 + $0x578] sm:$0xff]
    %v253 = vld [vmem:[#allocation5 + $0x580] sm:$0xff]
    %v254 = vld [vmem:[#allocation5 + $0x588] sm:$0xff]
    %v255 = vld [vmem:[#allocation5 + $0x590] sm:$0xff]
    %v256 = vld [vmem:[#allocation5 + $0x598] sm:$0xff]
    %v257 = vld [vmem:[#allocation5 + $0x5a0] sm:$0xff]
    %v258 = vld [vmem:[#allocation5 + $0x5a8] sm:$0xff]
    %v259 = vld [vmem:[#allocation5 + $0x5b0] sm:$0xff]
    %v260 = vld [vmem:[#allocation5 + $0x5b8] sm:$0xff]
    %v261 = vld [vmem:[#allocation5 + $0x5c0] sm:$0xff]
    %v262 = vld [vmem:[#allocation5 + $0x5c8] sm:$0xff]
    %v263 = vld [vmem:[#allocation5 + $0x5d0] sm:$0xff]
    %v264 = vld [vmem:[#allocation5 + $0x5d8] sm:$0xff]
    %v265 = vld [vmem:[#allocation5 + $0x5e0] sm:$0xff]
    %v266 = vld [vmem:[#allocation5 + $0x5e8] sm:$0xff]
    %v267 = vld [vmem:[#allocation5 + $0x5f0] sm:$0xff]
    %v268 = vld [vmem:[#allocation5 + $0x5f8] sm:$0xff]
    %v269 = vld [vmem:[#allocation5 + $0x600] sm:$0xff]
    %v270 = vld [vmem:[#allocation5 + $0x608] sm:$0xff]
    %v271 = vld [vmem:[#allocation5 + $0x610] sm:$0xff]
    %v272 = vld [vmem:[#allocation5 + $0x618] sm:$0xff]
    %v273 = vld [vmem:[#allocation5 + $0x620] sm:$0xff]
    %v274 = vld [vmem:[#allocation5 + $0x628] sm:$0xff]
    %v275 = vld [vmem:[#allocation5 + $0x630] sm:$0xff]
    %v276 = vld [vmem:[#allocation5 + $0x638] sm:$0xff]
    %v277 = vld [vmem:[#allocation5 + $0x640] sm:$0xff]
    %v278 = vld [vmem:[#allocation5 + $0x648] sm:$0xff]
    %v279 = vld [vmem:[#allocation5 + $0x650] sm:$0xff]
    %v280 = vld [vmem:[#allocation5 + $0x658] sm:$0xff]
    %v281 = vld [vmem:[#allocation5 + $0x660] sm:$0xff]
    %v282 = vld [vmem:[#allocation5 + $0x668] sm:$0xff]
    %v283 = vld [vmem:[#allocation5 + $0x670] sm:$0xff]
    %v284 = vld [vmem:[#allocation5 + $0x678] sm:$0xff]
    %v285 = vld [vmem:[#allocation5 + $0x680] sm:$0xff]
    %v286 = vld [vmem:[#allocation5 + $0x688] sm:$0xff]
    %v287 = vld [vmem:[#allocation5 + $0x690] sm:$0xff]
    %v288 = vld [vmem:[#allocation5 + $0x698] sm:$0xff]
    %v289 = vld [vmem:[#allocation5 + $0x6a0] sm:$0xff]
    %v290 = vld [vmem:[#allocation5 + $0x6a8] sm:$0xff]
    %v291 = vld [vmem:[#allocation5 + $0x6b0] sm:$0xff]
    %v292 = vld [vmem:[#allocation5 + $0x6b8] sm:$0xff]
    %v293 = vld [vmem:[#allocation5 + $0x6c0] sm:$0xff]
    %v294 = vld [vmem:[#allocation5 + $0x6c8] sm:$0xff]
    %v295 = vld [vmem:[#allocation5 + $0x6d0] sm:$0xff]
    %v296 = vld [vmem:[#allocation5 + $0x6d8] sm:$0xff]
    %v297 = vld [vmem:[#allocation5 + $0x6e0] sm:$0xff]
    %v298 = vld [vmem:[#allocation5 + $0x6e8] sm:$0xff]
    %v299 = vld [vmem:[#allocation5 + $0x6f0] sm:$0xff]
    %v300 = vld [vmem:[#allocation5 + $0x6f8] sm:$0xff]
    %v301 = vld [vmem:[#allocation5 + $0x700] sm:$0xff]
    %v302 = vld [vmem:[#allocation5 + $0x708] sm:$0xff]
    %v303 = vld [vmem:[#allocation5 + $0x710] sm:$0xff]
    %v304 = vld [vmem:[#allocation5 + $0x718] sm:$0xff]
    %v305 = vld [vmem:[#allocation5 + $0x720] sm:$0xff]
    %v306 = vld [vmem:[#allocation5 + $0x728] sm:$0xff]
    %v307 = vld [vmem:[#allocation5 + $0x730] sm:$0xff]
    %v308 = vld [vmem:[#allocation5 + $0x738] sm:$0xff]
    %v309 = vld [vmem:[#allocation5 + $0x740] sm:$0xff]
    %v310 = vld [vmem:[#allocation5 + $0x748] sm:$0xff]
    %v311 = vld [vmem:[#allocation5 + $0x750] sm:$0xff]
    %v312 = vld [vmem:[#allocation5 + $0x758] sm:$0xff]
    %v313 = vld [vmem:[#allocation5 + $0x760] sm:$0xff]
    %v314 = vld [vmem:[#allocation5 + $0x768] sm:$0xff]
    %v315 = vld [vmem:[#allocation5 + $0x770] sm:$0xff]
    %v316 = vld [vmem:[#allocation5 + $0x778] sm:$0xff]
    %v317 = vld [vmem:[#allocation5 + $0x780] sm:$0xff]
    %v318 = vld [vmem:[#allocation5 + $0x788] sm:$0xff]
    %v319 = vld [vmem:[#allocation5 + $0x790] sm:$0xff]
    %v320 = vld [vmem:[#allocation5 + $0x798] sm:$0xff]
    %v321 = vld [vmem:[#allocation5 + $0x7a0] sm:$0xff]
    %v322 = vld [vmem:[#allocation5 + $0x7a8] sm:$0xff]
    %v323 = vld [vmem:[#allocation5 + $0x7b0] sm:$0xff]
    %v324 = vld [vmem:[#allocation5 + $0x7b8] sm:$0xff]
    %v325 = vld [vmem:[#allocation5 + $0x7c0] sm:$0xff]
    %v326 = vld [vmem:[#allocation5 + $0x7c8] sm:$0xff]
    %v327 = vld [vmem:[#allocation5 + $0x7d0] sm:$0xff]
    %v328 = vld [vmem:[#allocation5 + $0x7d8] sm:$0xff]
    %v329 = vld [vmem:[#allocation5 + $0x7e0] sm:$0xff]
    %v330 = vld [vmem:[#allocation5 + $0x7e8] sm:$0xff]
    %v331 = vld [vmem:[#allocation5 + $0x7f0] sm:$0xff]
    %v332 = vld [vmem:[#allocation5 + $0x7f8] sm:$0xff]
    %v333 = vld [vmem:[#allocation5 + $0x800] sm:$0xff]
    %v334 = vld [vmem:[#allocation5 + $0x808] sm:$0xff]
    %v335 = vld [vmem:[#allocation5 + $0x810] sm:$0xff]
    %v336 = vld [vmem:[#allocation5 + $0x818] sm:$0xff]
    %v337 = vld [vmem:[#allocation5 + $0x820] sm:$0xff]
    %v338 = vld [vmem:[#allocation5 + $0x828] sm:$0xff]
    %v339 = vld [vmem:[#allocation5 + $0x830] sm:$0xff]
    %v340 = vld [vmem:[#allocation5 + $0x838] sm:$0xff]
    %v341 = vld [vmem:[#allocation5 + $0x840] sm:$0xff]
    %v342 = vld [vmem:[#allocation5 + $0x848] sm:$0xff]
    %v343 = vld [vmem:[#allocation5 + $0x850] sm:$0xff]
    %v344 = vld [vmem:[#allocation5 + $0x858] sm:$0xff]
    %v345 = vld [vmem:[#allocation5 + $0x860] sm:$0xff]
    %v346 = vld [vmem:[#allocation5 + $0x868] sm:$0xff]
    %v347 = vld [vmem:[#allocation5 + $0x870] sm:$0xff]
    %v348 = vld [vmem:[#allocation5 + $0x878] sm:$0xff]
    %v349 = vld [vmem:[#allocation5 + $0x880] sm:$0xff]
    %v350 = vld [vmem:[#allocation5 + $0x888] sm:$0xff]
    %v351 = vld [vmem:[#allocation5 + $0x890] sm:$0xff]
    %v352 = vld [vmem:[#allocation5 + $0x898] sm:$0xff]
    %v353 = vld [vmem:[#allocation5 + $0x8a0] sm:$0xff]
    %v354 = vld [vmem:[#allocation5 + $0x8a8] sm:$0xff]
    %v355 = vld [vmem:[#allocation5 + $0x8b0] sm:$0xff]
    %v356 = vld [vmem:[#allocation5 + $0x8b8] sm:$0xff]
    %v357 = vld [vmem:[#allocation5 + $0x8c0] sm:$0xff]
    %v358 = vld [vmem:[#allocation5 + $0x8c8] sm:$0xff]
    %v359 = vld [vmem:[#allocation5 + $0x8d0] sm:$0xff]
    %v360 = vld [vmem:[#allocation5 + $0x8d8] sm:$0xff]
    %v361 = vld [vmem:[#allocation5 + $0x8e0] sm:$0xff]
    %v362 = vld [vmem:[#allocation5 + $0x8e8] sm:$0xff]
    %v363 = vld [vmem:[#allocation5 + $0x8f0] sm:$0xff]
    %v364 = vld [vmem:[#allocation5 + $0x8f8] sm:$0xff]
    %v365 = vld [vmem:[#allocation5 + $0x900] sm:$0xff]
    %v366 = vld [vmem:[#allocation5 + $0x908] sm:$0xff]
    %v367 = vld [vmem:[#allocation5 + $0x910] sm:$0xff]
    %v368 = vld [vmem:[#allocation5 + $0x918] sm:$0xff]
    %v369 = vld [vmem:[#allocation5 + $0x920] sm:$0xff]
    %v370 = vld [vmem:[#allocation5 + $0x928] sm:$0xff]
    %v371 = vld [vmem:[#allocation5 + $0x930] sm:$0xff]
    %v372 = vld [vmem:[#allocation5 + $0x938] sm:$0xff]
    %v373 = vld [vmem:[#allocation5 + $0x940] sm:$0xff]
    %v374 = vld [vmem:[#allocation5 + $0x948] sm:$0xff]
    %v375 = vld [vmem:[#allocation5 + $0x950] sm:$0xff]
    %v376 = vld [vmem:[#allocation5 + $0x958] sm:$0xff]
    %v377 = vld [vmem:[#allocation5 + $0x960] sm:$0xff]
    %v378 = vld [vmem:[#allocation5 + $0x968] sm:$0xff]
    %v379 = vld [vmem:[#allocation5 + $0x970] sm:$0xff]
    %v380 = vld [vmem:[#allocation5 + $0x978] sm:$0xff]
    %v381 = vld [vmem:[#allocation5 + $0x980] sm:$0xff]
    %v382 = vld [vmem:[#allocation5 + $0x988] sm:$0xff]
    %v383 = vld [vmem:[#allocation5 + $0x990] sm:$0xff]
    %v384 = vld [vmem:[#allocation5 + $0x998] sm:$0xff]
    %v385 = vld [vmem:[#allocation5 + $0x9a0] sm:$0xff]
    %v386 = vld [vmem:[#allocation5 + $0x9a8] sm:$0xff]
    %v387 = vld [vmem:[#allocation5 + $0x9b0] sm:$0xff]
    %v388 = vld [vmem:[#allocation5 + $0x9b8] sm:$0xff]
    %v389 = vld [vmem:[#allocation5 + $0x9c0] sm:$0xff]
    %v390 = vld [vmem:[#allocation5 + $0x9c8] sm:$0xff]
    %v391 = vld [vmem:[#allocation5 + $0x9d0] sm:$0xff]
    %v392 = vld [vmem:[#allocation5 + $0x9d8] sm:$0xff]
    %v393 = vld [vmem:[#allocation5 + $0x9e0] sm:$0xff]
    %v394 = vld [vmem:[#allocation5 + $0x9e8] sm:$0xff]
    %v395 = vld [vmem:[#allocation5 + $0x9f0] sm:$0xff]
    %v396 = vld [vmem:[#allocation5 + $0x9f8] sm:$0xff]
    %v397 = vld [vmem:[#allocation5 + $0xa00] sm:$0xff]
    %v398 = vld [vmem:[#allocation5 + $0xa08] sm:$0xff]
    %v399 = vld [vmem:[#allocation5 + $0xa10] sm:$0xff]
    %v400 = vld [vmem:[#allocation5 + $0xa18] sm:$0xff]
    %v401 = vld [vmem:[#allocation5 + $0xa20] sm:$0xff]
    %v402 = vld [vmem:[#allocation5 + $0xa28] sm:$0xff]
    %v403 = vld [vmem:[#allocation5 + $0xa30] sm:$0xff]
    %v404 = vld [vmem:[#allocation5 + $0xa38] sm:$0xff]
    %v405 = vld [vmem:[#allocation5 + $0xa40] sm:$0xff]
    %v406 = vld [vmem:[#allocation5 + $0xa48] sm:$0xff]
    %v407 = vld [vmem:[#allocation5 + $0xa50] sm:$0xff]
    %v408 = vld [vmem:[#allocation5 + $0xa58] sm:$0xff]
    %v409 = vld [vmem:[#allocation5 + $0xa60] sm:$0xff]
    %v410 = vld [vmem:[#allocation5 + $0xa68] sm:$0xff]
    %v411 = vld [vmem:[#allocation5 + $0xa70] sm:$0xff]
    %v412 = vld [vmem:[#allocation5 + $0xa78] sm:$0xff]
    %v413 = vld [vmem:[#allocation5 + $0xa80] sm:$0xff]
    %v414 = vld [vmem:[#allocation5 + $0xa88] sm:$0xff]
    %v415 = vld [vmem:[#allocation5 + $0xa90] sm:$0xff]
    %v416 = vld [vmem:[#allocation5 + $0xa98] sm:$0xff]
    %v417 = vld [vmem:[#allocation5 + $0xaa0] sm:$0xff]
    %v418 = vld [vmem:[#allocation5 + $0xaa8] sm:$0xff]
    %v419 = vld [vmem:[#allocation5 + $0xab0] sm:$0xff]
    %v420 = vld [vmem:[#allocation5 + $0xab8] sm:$0xff]
    %v421 = vld [vmem:[#allocation5 + $0xac0] sm:$0xff]
    %v422 = vld [vmem:[#allocation5 + $0xac8] sm:$0xff]
    %v423 = vld [vmem:[#allocation5 + $0xad0] sm:$0xff]
    %v424 = vld [vmem:[#allocation5 + $0xad8] sm:$0xff]
    %v425 = vld [vmem:[#allocation5 + $0xae0] sm:$0xff]
    %v426 = vld [vmem:[#allocation5 + $0xae8] sm:$0xff]
    %v427 = vld [vmem:[#allocation5 + $0xaf0] sm:$0xff]
    %v428 = vld [vmem:[#allocation5 + $0xaf8] sm:$0xff]
    %v429 = vld [vmem:[#allocation5 + $0xb00] sm:$0xff]
    %v430 = vld [vmem:[#allocation5 + $0xb08] sm:$0xff]
    %v431 = vld [vmem:[#allocation5 + $0xb10] sm:$0xff]
    %v432 = vld [vmem:[#allocation5 + $0xb18] sm:$0xff]
    %v433 = vld [vmem:[#allocation5 + $0xb20] sm:$0xff]
    %v434 = vld [vmem:[#allocation5 + $0xb28] sm:$0xff]
    %v435 = vld [vmem:[#allocation5 + $0xb30] sm:$0xff]
    %v436 = vld [vmem:[#allocation5 + $0xb38] sm:$0xff]
    %v437 = vld [vmem:[#allocation5 + $0xb40] sm:$0xff]
    %v438 = vld [vmem:[#allocation5 + $0xb48] sm:$0xff]
    %v439 = vld [vmem:[#allocation5 + $0xb50] sm:$0xff]
    %v440 = vld [vmem:[#allocation5 + $0xb58] sm:$0xff]
    %v441 = vld [vmem:[#allocation5 + $0xb60] sm:$0xff]
    %v442 = vld [vmem:[#allocation5 + $0xb68] sm:$0xff]
    %v443 = vld [vmem:[#allocation5 + $0xb70] sm:$0xff]
    %v444 = vld [vmem:[#allocation5 + $0xb78] sm:$0xff]
    %v445 = vld [vmem:[#allocation5 + $0xb80] sm:$0xff]
    %v446 = vld [vmem:[#allocation5 + $0xb88] sm:$0xff]
    %v447 = vld [vmem:[#allocation5 + $0xb90] sm:$0xff]
    %v448 = vld [vmem:[#allocation5 + $0xb98] sm:$0xff]
    %v449 = vld [vmem:[#allocation5 + $0xba0] sm:$0xff]
    %v450 = vld [vmem:[#allocation5 + $0xba8] sm:$0xff]
    %v451 = vld [vmem:[#allocation5 + $0xbb0] sm:$0xff]
    %v452 = vld [vmem:[#allocation5 + $0xbb8] sm:$0xff]
    %v453 = vld [vmem:[#allocation5 + $0xbc0] sm:$0xff]
    %v454 = vld [vmem:[#allocation5 + $0xbc8] sm:$0xff]
    %v455 = vld [vmem:[#allocation5 + $0xbd0] sm:$0xff]
    %v456 = vld [vmem:[#allocation5 + $0xbd8] sm:$0xff]
    %v457 = vld [vmem:[#allocation5 + $0xbe0] sm:$0xff]
    %v458 = vld [vmem:[#allocation5 + $0xbe8] sm:$0xff]
    %v459 = vld [vmem:[#allocation5 + $0xbf0] sm:$0xff]
    %v460 = vld [vmem:[#allocation5 + $0xbf8] sm:$0xff]
    %v461 = vld [vmem:[#allocation5 + $0xc00] sm:$0xff]
    %v462 = vld [vmem:[#allocation5 + $0xc08] sm:$0xff]
    %v463 = vld [vmem:[#allocation5 + $0xc10] sm:$0xff]
    %v464 = vld [vmem:[#allocation5 + $0xc18] sm:$0xff]
    %v465 = vld [vmem:[#allocation5 + $0xc20] sm:$0xff]
    %v466 = vld [vmem:[#allocation5 + $0xc28] sm:$0xff]
    %v467 = vld [vmem:[#allocation5 + $0xc30] sm:$0xff]
    %v468 = vld [vmem:[#allocation5 + $0xc38] sm:$0xff]
    %v469 = vld [vmem:[#allocation5 + $0xc40] sm:$0xff]
    %v470 = vld [vmem:[#allocation5 + $0xc48] sm:$0xff]
    %v471 = vld [vmem:[#allocation5 + $0xc50] sm:$0xff]
    %v472 = vld [vmem:[#allocation5 + $0xc58] sm:$0xff]
    %v473 = vld [vmem:[#allocation5 + $0xc60] sm:$0xff]
    %v474 = vld [vmem:[#allocation5 + $0xc68] sm:$0xff]
    %v475 = vld [vmem:[#allocation5 + $0xc70] sm:$0xff]
    %v476 = vld [vmem:[#allocation5 + $0xc78] sm:$0xff]
    %v477 = vld [vmem:[#allocation5 + $0xc80] sm:$0xff]
    %v478 = vld [vmem:[#allocation5 + $0xc88] sm:$0xff]
    %v479 = vld [vmem:[#allocation5 + $0xc90] sm:$0xff]
    %v480 = vld [vmem:[#allocation5 + $0xc98] sm:$0xff]
    %v481 = vld [vmem:[#allocation5 + $0xca0] sm:$0xff]
    %v482 = vld [vmem:[#allocation5 + $0xca8] sm:$0xff]
    %v483 = vld [vmem:[#allocation5 + $0xcb0] sm:$0xff]
    %v484 = vld [vmem:[#allocation5 + $0xcb8] sm:$0xff]
    %v485 = vld [vmem:[#allocation5 + $0xcc0] sm:$0xff]
    %v486 = vld [vmem:[#allocation5 + $0xcc8] sm:$0xff]
    %v487 = vld [vmem:[#allocation5 + $0xcd0] sm:$0xff]
    %v488 = vld [vmem:[#allocation5 + $0xcd8] sm:$0xff]
    %v489 = vld [vmem:[#allocation5 + $0xce0] sm:$0xff]
    %v490 = vld [vmem:[#allocation5 + $0xce8] sm:$0xff]
    %v491 = vld [vmem:[#allocation5 + $0xcf0] sm:$0xff]
    %v492 = vld [vmem:[#allocation5 + $0xcf8] sm:$0xff]
    %v493 = vld [vmem:[#allocation5 + $0xd00] sm:$0xff]
    %v494 = vld [vmem:[#allocation5 + $0xd08] sm:$0xff]
    %v495 = vld [vmem:[#allocation5 + $0xd10] sm:$0xff]
    %v496 = vld [vmem:[#allocation5 + $0xd18] sm:$0xff]
    %v497 = vld [vmem:[#allocation5 + $0xd20] sm:$0xff]
    %v498 = vld [vmem:[#allocation5 + $0xd28] sm:$0xff]
    %v499 = vld [vmem:[#allocation5 + $0xd30] sm:$0xff]
    %v500 = vld [vmem:[#allocation5 + $0xd38] sm:$0xff]
    %v501 = vld [vmem:[#allocation5 + $0xd40] sm:$0xff]
    %v502 = vld [vmem:[#allocation5 + $0xd48] sm:$0xff]
    %v503 = vld [vmem:[#allocation5 + $0xd50] sm:$0xff]
    %v504 = vld [vmem:[#allocation5 + $0xd58] sm:$0xff]
    %v505 = vld [vmem:[#allocation5 + $0xd60] sm:$0xff]
    %v506 = vld [vmem:[#allocation5 + $0xd68] sm:$0xff]
    %v507 = vld [vmem:[#allocation5 + $0xd70] sm:$0xff]
    %v508 = vld [vmem:[#allocation5 + $0xd78] sm:$0xff]
    %v509 = vld [vmem:[#allocation5 + $0xd80] sm:$0xff]
    %v510 = vld [vmem:[#allocation5 + $0xd88] sm:$0xff]
    %v511 = vld [vmem:[#allocation5 + $0xd90] sm:$0xff]
    %v512 = vld [vmem:[#allocation5 + $0xd98] sm:$0xff]
    %v513 = vld [vmem:[#allocation5 + $0xda0] sm:$0xff]
    %v514 = vld [vmem:[#allocation5 + $0xda8] sm:$0xff]
    %v515 = vld [vmem:[#allocation5 + $0xdb0] sm:$0xff]
    %v516 = vld [vmem:[#allocation5 + $0xdb8] sm:$0xff]
    %v517 = vld [vmem:[#allocation5 + $0xdc0] sm:$0xff]
    %v518 = vld [vmem:[#allocation5 + $0xdc8] sm:$0xff]
    %v519 = vld [vmem:[#allocation5 + $0xdd0] sm:$0xff]
    %v520 = vld [vmem:[#allocation5 + $0xdd8] sm:$0xff]
    %v521 = vld [vmem:[#allocation5 + $0xde0] sm:$0xff]
    %v522 = vld [vmem:[#allocation5 + $0xde8] sm:$0xff]
    %v523 = vld [vmem:[#allocation5 + $0xdf0] sm:$0xff]
    %v524 = vld [vmem:[#allocation5 + $0xdf8] sm:$0xff]
    %v525 = vld [vmem:[#allocation5 + $0xe00] sm:$0xff]
    %v526 = vld [vmem:[#allocation5 + $0xe08] sm:$0xff]
    %v527 = vld [vmem:[#allocation5 + $0xe10] sm:$0xff]
    %v528 = vld [vmem:[#allocation5 + $0xe18] sm:$0xff]
    %v529 = vld [vmem:[#allocation5 + $0xe20] sm:$0xff]
    %v530 = vld [vmem:[#allocation5 + $0xe28] sm:$0xff]
    %v531 = vld [vmem:[#allocation5 + $0xe30] sm:$0xff]
    %v532 = vld [vmem:[#allocation5 + $0xe38] sm:$0xff]
    %v533 = vld [vmem:[#allocation5 + $0xe40] sm:$0xff]
    %v534 = vld [vmem:[#allocation5 + $0xe48] sm:$0xff]
    %v535 = vld [vmem:[#allocation5 + $0xe50] sm:$0xff]
    %v536 = vld [vmem:[#allocation5 + $0xe58] sm:$0xff]
    %v537 = vld [vmem:[#allocation5 + $0xe60] sm:$0xff]
    %v538 = vld [vmem:[#allocation5 + $0xe68] sm:$0xff]
    %v539 = vld [vmem:[#allocation5 + $0xe70] sm:$0xff]
    %v540 = vld [vmem:[#allocation5 + $0xe78] sm:$0xff]
    %v541 = vld [vmem:[#allocation5 + $0xe80] sm:$0xff]
    %v542 = vld [vmem:[#allocation5 + $0xe88] sm:$0xff]
    %v543 = vld [vmem:[#allocation5 + $0xe90] sm:$0xff]
    %v544 = vld [vmem:[#allocation5 + $0xe98] sm:$0xff]
    %v545 = vld [vmem:[#allocation5 + $0xea0] sm:$0xff]
    %v546 = vld [vmem:[#allocation5 + $0xea8] sm:$0xff]
    %v547 = vld [vmem:[#allocation5 + $0xeb0] sm:$0xff]
    %v548 = vld [vmem:[#allocation5 + $0xeb8] sm:$0xff]
    %v549 = vld [vmem:[#allocation5 + $0xec0] sm:$0xff]
    %v550 = vld [vmem:[#allocation5 + $0xec8] sm:$0xff]
    %v551 = vld [vmem:[#allocation5 + $0xed0] sm:$0xff]
    %v552 = vld [vmem:[#allocation5 + $0xed8] sm:$0xff]
    %v553 = vld [vmem:[#allocation5 + $0xee0] sm:$0xff]
    %v554 = vld [vmem:[#allocation5 + $0xee8] sm:$0xff]
    %v555 = vld [vmem:[#allocation5 + $0xef0] sm:$0xff]
    %v556 = vld [vmem:[#allocation5 + $0xef8] sm:$0xff]
    %v557 = vld [vmem:[#allocation5 + $0xf00] sm:$0xff]
    %v558 = vld [vmem:[#allocation5 + $0xf08] sm:$0xff]
    %v559 = vld [vmem:[#allocation5 + $0xf10] sm:$0xff]
    %v560 = vld [vmem:[#allocation5 + $0xf18] sm:$0xff]
    %v561 = vld [vmem:[#allocation5 + $0xf20] sm:$0xff]
    %v562 = vld [vmem:[#allocation5 + $0xf28] sm:$0xff]
    %v563 = vld [vmem:[#allocation5 + $0xf30] sm:$0xff]
    %v564 = vld [vmem:[#allocation5 + $0xf38] sm:$0xff]
    %v565 = vld [vmem:[#allocation5 + $0xf40] sm:$0xff]
    %v566 = vld [vmem:[#allocation5 + $0xf48] sm:$0xff]
    %v567 = vld [vmem:[#allocation5 + $0xf50] sm:$0xff]
    %v568 = vld [vmem:[#allocation5 + $0xf58] sm:$0xff]
    %v569 = vld [vmem:[#allocation5 + $0xf60] sm:$0xff]
    %v570 = vld [vmem:[#allocation5 + $0xf68] sm:$0xff]
    %v571 = vld [vmem:[#allocation5 + $0xf70] sm:$0xff]
    %v572 = vld [vmem:[#allocation5 + $0xf78] sm:$0xff]
    %v573 = vld [vmem:[#allocation5 + $0xf80] sm:$0xff]
    %v574 = vld [vmem:[#allocation5 + $0xf88] sm:$0xff]
    %v575 = vld [vmem:[#allocation5 + $0xf90] sm:$0xff]
    %v576 = vld [vmem:[#allocation5 + $0xf98] sm:$0xff]
    %v577 = vld [vmem:[#allocation5 + $0xfa0] sm:$0xff]
    %v578 = vld [vmem:[#allocation5 + $0xfa8] sm:$0xff]
    %v579 = vld [vmem:[#allocation5 + $0xfb0] sm:$0xff]
    %v580 = vld [vmem:[#allocation5 + $0xfb8] sm:$0xff]
    %v581 = vld [vmem:[#allocation5 + $0xfc0] sm:$0xff]
    %v582 = vld [vmem:[#allocation5 + $0xfc8] sm:$0xff]
    %v583 = vld [vmem:[#allocation5 + $0xfd0] sm:$0xff]
    %v584 = vld [vmem:[#allocation5 + $0xfd8] sm:$0xff]
    %v585 = vld [vmem:[#allocation5 + $0xfe0] sm:$0xff]
    %v586 = vld [vmem:[#allocation5 + $0xfe8] sm:$0xff]
    %v587 = vld [vmem:[#allocation5 + $0xff0] sm:$0xff]
    %v588 = vld [vmem:[#allocation5 + $0xff8] sm:$0xff]
    %v589 = vld [vmem:[#allocation7] sm:$0xf]
    %v591 = vlaneseq
    %v592 = vshrl.u32 %v591, 7
    %v593 = vsub.s32 0, %v592
    %v594 = vrot.slane %v589, %v593
    %v595 = vlaneseq
    %v596 = vshrl.u32 %v595, 7
    %v597 = vsub.s32 1, %v596
    %v598 = vrot.slane %v589, %v597
    %v599 = vlaneseq
    %v600 = vshrl.u32 %v599, 7
    %v601 = vsub.s32 2, %v600
    %v602 = vrot.slane %v589, %v601
    %v603 = vlaneseq
    %v604 = vshrl.u32 %v603, 7
    %v605 = vsub.s32 3, %v604
    %v606 = vrot.slane %v589, %v605
    %611 = vmatprep.subr.mxu0 %v78
    %612 = vmatpush1.msra.mxu0 %v77
    %613 = vmatprep.subr.mxu0 %v82
    %614 = vmatpush1.msra.mxu0 %v81
    %615 = vmatprep.subr.mxu0 %v86
    %616 = vmatpush1.msra.mxu0 %v85
    %617 = vmatprep.subr.mxu0 %v90
    %618 = vmatpush1.msra.mxu0 %v89
    %619 = vmatprep.subr.mxu0 %v94
    %620 = vmatpush1.msra.mxu0 %v93
    %621 = vmatprep.subr.mxu0 %v98
    %622 = vmatpush1.msra.mxu0 %v97
    %623 = vmatprep.subr.mxu0 %v102
    %624 = vmatpush1.msra.mxu0 %v101
    %625 = vmatprep.subr.mxu0 %v106
    %626 = vmatpush1.msra.mxu0 %v105
    %627 = vmatprep.subr.mxu0 %v110
    %628 = vmatpush1.msra.mxu0 %v109
    %629 = vmatprep.subr.mxu0 %v114
    %630 = vmatpush1.msra.mxu0 %v113
    %631 = vmatprep.subr.mxu0 %v118
    %632 = vmatpush1.msra.mxu0 %v117
    %633 = vmatprep.subr.mxu0 %v122
    %634 = vmatpush1.msra.mxu0 %v121
    %635 = vmatprep.subr.mxu0 %v126
    %636 = vmatpush1.msra.mxu0 %v125
    %637 = vmatprep.subr.mxu0 %v130
    %638 = vmatpush1.msra.mxu0 %v129
    %639 = vmatprep.subr.mxu0 %v134
    %640 = vmatpush1.msra.mxu0 %v133
    %641 = vmatprep.subr.mxu0 %v138
    %642 = vmatpush1.msra.mxu0 %v137
    %643 = vmatprep.subr.mxu0 %v142
    %644 = vmatpush1.msra.mxu0 %v141
    %645 = vmatprep.subr.mxu0 %v146
    %646 = vmatpush1.msra.mxu0 %v145
    %647 = vmatprep.subr.mxu0 %v150
    %648 = vmatpush1.msra.mxu0 %v149
    %649 = vmatprep.subr.mxu0 %v154
    %650 = vmatpush1.msra.mxu0 %v153
    %651 = vmatprep.subr.mxu0 %v158
    %652 = vmatpush1.msra.mxu0 %v157
    %653 = vmatprep.subr.mxu0 %v162
    %654 = vmatpush1.msra.mxu0 %v161
    %655 = vmatprep.subr.mxu0 %v166
    %656 = vmatpush1.msra.mxu0 %v165
    %657 = vmatprep.subr.mxu0 %v170
    %658 = vmatpush1.msra.mxu0 %v169
    %659 = vmatprep.subr.mxu0 %v174
    %660 = vmatpush1.msra.mxu0 %v173
    %661 = vmatprep.subr.mxu0 %v178
    %662 = vmatpush1.msra.mxu0 %v177
    %663 = vmatprep.subr.mxu0 %v182
    %664 = vmatpush1.msra.mxu0 %v181
    %665 = vmatprep.subr.mxu0 %v186
    %666 = vmatpush1.msra.mxu0 %v185
    %667 = vmatprep.subr.mxu0 %v190
    %668 = vmatpush1.msra.mxu0 %v189
    %669 = vmatprep.subr.mxu0 %v194
    %670 = vmatpush1.msra.mxu0 %v193
    %671 = vmatprep.subr.mxu0 %v198
    %672 = vmatpush1.msra.mxu0 %v197
    %673 = vmatprep.subr.mxu0 %v202
    %674 = vmatpush1.msra.mxu0 %v201
    %675 = vmatprep.mubr.f32.mxu0 %v70
    %676 = vmatmul.mubr.f32.gmra.mrb[0].mxu0 %v69
    %v677 = vpop.f32.mrb[0].mxu0
    %v678 = vadd.f32 %v594, %v677
    %v679 = vpop.f32.mrb[0].mxu0
    %v680 = vadd.f32 %v598, %v679
    %681 = vdwg.mxu0
    %682 = vmatprep.subr.mxu0 %v206
    %683 = vmatpush1.msra.mxu0 %v205
    %684 = vmatprep.subr.mxu0 %v210
    %685 = vmatpush1.msra.mxu0 %v209
    %686 = vmatprep.subr.mxu0 %v214
    %687 = vmatpush1.msra.mxu0 %v213
    %688 = vmatprep.subr.mxu0 %v218
    %689 = vmatpush1.msra.mxu0 %v217
    %690 = vmatprep.subr.mxu0 %v222
    %691 = vmatpush1.msra.mxu0 %v221
    %692 = vmatprep.subr.mxu0 %v226
    %693 = vmatpush1.msra.mxu0 %v225
    %694 = vmatprep.subr.mxu0 %v230
    %695 = vmatpush1.msra.mxu0 %v229
    %696 = vmatprep.subr.mxu0 %v234
    %697 = vmatpush1.msra.mxu0 %v233
    %698 = vmatprep.subr.mxu0 %v238
    %699 = vmatpush1.msra.mxu0 %v237
    %700 = vmatprep.subr.mxu0 %v242
    %701 = vmatpush1.msra.mxu0 %v241
    %702 = vmatprep.subr.mxu0 %v246
    %703 = vmatpush1.msra.mxu0 %v245
    %704 = vmatprep.subr.mxu0 %v250
    %705 = vmatpush1.msra.mxu0 %v249
    %706 = vmatprep.subr.mxu0 %v254
    %707 = vmatpush1.msra.mxu0 %v253
    %708 = vmatprep.subr.mxu0 %v258
    %709 = vmatpush1.msra.mxu0 %v257
    %710 = vmatprep.subr.mxu0 %v262
    %711 = vmatpush1.msra.mxu0 %v261
    %712 = vmatprep.subr.mxu0 %v266
    %713 = vmatpush1.msra.mxu0 %v265
    %714 = vmatprep.subr.mxu0 %v270
    %715 = vmatpush1.msra.mxu0 %v269
    %716 = vmatprep.subr.mxu0 %v274
    %717 = vmatpush1.msra.mxu0 %v273
    %718 = vmatprep.subr.mxu0 %v278
    %719 = vmatpush1.msra.mxu0 %v277
    %720 = vmatprep.subr.mxu0 %v282
    %721 = vmatpush1.msra.mxu0 %v281
    %722 = vmatprep.subr.mxu0 %v286
    %723 = vmatpush1.msra.mxu0 %v285
    %724 = vmatprep.subr.mxu0 %v290
    %725 = vmatpush1.msra.mxu0 %v289
    %726 = vmatprep.subr.mxu0 %v294
    %727 = vmatpush1.msra.mxu0 %v293
    %728 = vmatprep.subr.mxu0 %v298
    %729 = vmatpush1.msra.mxu0 %v297
    %730 = vmatprep.subr.mxu0 %v302
    %731 = vmatpush1.msra.mxu0 %v301
    %732 = vmatprep.subr.mxu0 %v306
    %733 = vmatpush1.msra.mxu0 %v305
    %734 = vmatprep.subr.mxu0 %v310
    %735 = vmatpush1.msra.mxu0 %v309
    %736 = vmatprep.subr.mxu0 %v314
    %737 = vmatpush1.msra.mxu0 %v313
    %738 = vmatprep.subr.mxu0 %v318
    %739 = vmatpush1.msra.mxu0 %v317
    %740 = vmatprep.subr.mxu0 %v322
    %741 = vmatpush1.msra.mxu0 %v321
    %742 = vmatprep.subr.mxu0 %v326
    %743 = vmatpush1.msra.mxu0 %v325
    %744 = vmatprep.subr.mxu0 %v330
    %745 = vmatpush1.msra.mxu0 %v329
    %746 = vmatprep.mubr.f32.mxu0 %v72
    %747 = vmatmul.mubr.f32.gmra.mrb[0].mxu0 %v71
    %v748 = vpop.f32.mrb[0].mxu0
    %v749 = vadd.f32 %v678, %v748
    %v750 = vpop.f32.mrb[0].mxu0
    %v751 = vadd.f32 %v680, %v750
    %752 = vdwg.mxu0
    %753 = vmatprep.subr.mxu0 %v334
    %754 = vmatpush1.msra.mxu0 %v333
    %755 = vmatprep.subr.mxu0 %v338
    %756 = vmatpush1.msra.mxu0 %v337
    %757 = vmatprep.subr.mxu0 %v342
    %758 = vmatpush1.msra.mxu0 %v341
    %759 = vmatprep.subr.mxu0 %v346
    %760 = vmatpush1.msra.mxu0 %v345
    %761 = vmatprep.subr.mxu0 %v350
    %762 = vmatpush1.msra.mxu0 %v349
    %763 = vmatprep.subr.mxu0 %v354
    %764 = vmatpush1.msra.mxu0 %v353
    %765 = vmatprep.subr.mxu0 %v358
    %766 = vmatpush1.msra.mxu0 %v357
    %767 = vmatprep.subr.mxu0 %v362
    %768 = vmatpush1.msra.mxu0 %v361
    %769 = vmatprep.subr.mxu0 %v366
    %770 = vmatpush1.msra.mxu0 %v365
    %771 = vmatprep.subr.mxu0 %v370
    %772 = vmatpush1.msra.mxu0 %v369
    %773 = vmatprep.subr.mxu0 %v374
    %774 = vmatpush1.msra.mxu0 %v373
    %775 = vmatprep.subr.mxu0 %v378
    %776 = vmatpush1.msra.mxu0 %v377
    %777 = vmatprep.subr.mxu0 %v382
    %778 = vmatpush1.msra.mxu0 %v381
    %779 = vmatprep.subr.mxu0 %v386
    %780 = vmatpush1.msra.mxu0 %v385
    %781 = vmatprep.subr.mxu0 %v390
    %782 = vmatpush1.msra.mxu0 %v389
    %783 = vmatprep.subr.mxu0 %v394
    %784 = vmatpush1.msra.mxu0 %v393
    %785 = vmatprep.subr.mxu0 %v398
    %786 = vmatpush1.msra.mxu0 %v397
    %787 = vmatprep.subr.mxu0 %v402
    %788 = vmatpush1.msra.mxu0 %v401
    %789 = vmatprep.subr.mxu0 %v406
    %790 = vmatpush1.msra.mxu0 %v405
    %791 = vmatprep.subr.mxu0 %v410
    %792 = vmatpush1.msra.mxu0 %v409
    %793 = vmatprep.subr.mxu0 %v414
    %794 = vmatpush1.msra.mxu0 %v413
    %795 = vmatprep.subr.mxu0 %v418
    %796 = vmatpush1.msra.mxu0 %v417
    %797 = vmatprep.subr.mxu0 %v422
    %798 = vmatpush1.msra.mxu0 %v421
    %799 = vmatprep.subr.mxu0 %v426
    %800 = vmatpush1.msra.mxu0 %v425
    %801 = vmatprep.subr.mxu0 %v430
    %802 = vmatpush1.msra.mxu0 %v429
    %803 = vmatprep.subr.mxu0 %v434
    %804 = vmatpush1.msra.mxu0 %v433
    %805 = vmatprep.subr.mxu0 %v438
    %806 = vmatpush1.msra.mxu0 %v437
    %807 = vmatprep.subr.mxu0 %v442
    %808 = vmatpush1.msra.mxu0 %v441
    %809 = vmatprep.subr.mxu0 %v446
    %810 = vmatpush1.msra.mxu0 %v445
    %811 = vmatprep.subr.mxu0 %v450
    %812 = vmatpush1.msra.mxu0 %v449
    %813 = vmatprep.subr.mxu0 %v454
    %814 = vmatpush1.msra.mxu0 %v453
    %815 = vmatprep.subr.mxu0 %v458
    %816 = vmatpush1.msra.mxu0 %v457
    %817 = vmatprep.mubr.f32.mxu0 %v74
    %818 = vmatmul.mubr.f32.gmra.mrb[0].mxu0 %v73
    %v819 = vpop.f32.mrb[0].mxu0
    %v820 = vadd.f32 %v749, %v819
    %v821 = vpop.f32.mrb[0].mxu0
    %v822 = vadd.f32 %v751, %v821
    %823 = vdwg.mxu0
    %824 = vmatprep.subr.mxu0 %v462
    %825 = vmatpush1.msra.mxu0 %v461
    %826 = vmatprep.subr.mxu0 %v466
    %827 = vmatpush1.msra.mxu0 %v465
    %828 = vmatprep.subr.mxu0 %v470
    %829 = vmatpush1.msra.mxu0 %v469
    %830 = vmatprep.subr.mxu0 %v474
    %831 = vmatpush1.msra.mxu0 %v473
    %832 = vmatprep.subr.mxu0 %v478
    %833 = vmatpush1.msra.mxu0 %v477
    %834 = vmatprep.subr.mxu0 %v482
    %835 = vmatpush1.msra.mxu0 %v481
    %836 = vmatprep.subr.mxu0 %v486
    %837 = vmatpush1.msra.mxu0 %v485
    %838 = vmatprep.subr.mxu0 %v490
    %839 = vmatpush1.msra.mxu0 %v489
    %840 = vmatprep.subr.mxu0 %v494
    %841 = vmatpush1.msra.mxu0 %v493
    %842 = vmatprep.subr.mxu0 %v498
    %843 = vmatpush1.msra.mxu0 %v497
    %844 = vmatprep.subr.mxu0 %v502
    %845 = vmatpush1.msra.mxu0 %v501
    %846 = vmatprep.subr.mxu0 %v506
    %847 = vmatpush1.msra.mxu0 %v505
    %848 = vmatprep.subr.mxu0 %v510
    %849 = vmatpush1.msra.mxu0 %v509
    %850 = vmatprep.subr.mxu0 %v514
    %851 = vmatpush1.msra.mxu0 %v513
    %852 = vmatprep.subr.mxu0 %v518
    %853 = vmatpush1.msra.mxu0 %v517
    %854 = vmatprep.subr.mxu0 %v522
    %855 = vmatpush1.msra.mxu0 %v521
    %856 = vmatprep.subr.mxu0 %v526
    %857 = vmatpush1.msra.mxu0 %v525
    %858 = vmatprep.subr.mxu0 %v530
    %859 = vmatpush1.msra.mxu0 %v529
    %860 = vmatprep.subr.mxu0 %v534
    %861 = vmatpush1.msra.mxu0 %v533
    %862 = vmatprep.subr.mxu0 %v538
    %863 = vmatpush1.msra.mxu0 %v537
    %864 = vmatprep.subr.mxu0 %v542
    %865 = vmatpush1.msra.mxu0 %v541
    %866 = vmatprep.subr.mxu0 %v546
    %867 = vmatpush1.msra.mxu0 %v545
    %868 = vmatprep.subr.mxu0 %v550
    %869 = vmatpush1.msra.mxu0 %v549
    %870 = vmatprep.subr.mxu0 %v554
    %871 = vmatpush1.msra.mxu0 %v553
    %872 = vmatprep.subr.mxu0 %v558
    %873 = vmatpush1.msra.mxu0 %v557
    %874 = vmatprep.subr.mxu0 %v562
    %875 = vmatpush1.msra.mxu0 %v561
    %876 = vmatprep.subr.mxu0 %v566
    %877 = vmatpush1.msra.mxu0 %v565
    %878 = vmatprep.subr.mxu0 %v570
    %879 = vmatpush1.msra.mxu0 %v569
    %880 = vmatprep.subr.mxu0 %v574
    %881 = vmatpush1.msra.mxu0 %v573
    %882 = vmatprep.subr.mxu0 %v578
    %883 = vmatpush1.msra.mxu0 %v577
    %884 = vmatprep.subr.mxu0 %v582
    %885 = vmatpush1.msra.mxu0 %v581
    %886 = vmatprep.subr.mxu0 %v586
    %887 = vmatpush1.msra.mxu0 %v585
    %888 = vmatprep.mubr.f32.mxu0 %v76
    %889 = vmatmul.mubr.f32.gmra.mrb[0].mxu0 %v75
    %v890 = vpop.f32.mrb[0].mxu0
    %v891 = vadd.f32 %v820, %v890
    %v892 = vpop.f32.mrb[0].mxu0
    %v893 = vadd.f32 %v822, %v892
    %894 = vdwg.mxu0
    %895 = vmatprep.subr.mxu0 %v80
    %896 = vmatpush1.msra.mxu0 %v79
    %897 = vmatprep.subr.mxu0 %v84
    %898 = vmatpush1.msra.mxu0 %v83
    %899 = vmatprep.subr.mxu0 %v88
    %900 = vmatpush1.msra.mxu0 %v87
    %901 = vmatprep.subr.mxu0 %v92
    %902 = vmatpush1.msra.mxu0 %v91
    %903 = vmatprep.subr.mxu0 %v96
    %904 = vmatpush1.msra.mxu0 %v95
    %905 = vmatprep.subr.mxu0 %v100
    %906 = vmatpush1.msra.mxu0 %v99
    %907 = vmatprep.subr.mxu0 %v104
    %908 = vmatpush1.msra.mxu0 %v103
    %909 = vmatprep.subr.mxu0 %v108
    %910 = vmatpush1.msra.mxu0 %v107
    %911 = vmatprep.subr.mxu0 %v112
    %912 = vmatpush1.msra.mxu0 %v111
    %913 = vmatprep.subr.mxu0 %v116
    %914 = vmatpush1.msra.mxu0 %v115
    %915 = vmatprep.subr.mxu0 %v120
    %916 = vmatpush1.msra.mxu0 %v119
    %917 = vmatprep.subr.mxu0 %v124
    %918 = vmatpush1.msra.mxu0 %v123
    %919 = vmatprep.subr.mxu0 %v128
    %920 = vmatpush1.msra.mxu0 %v127
    %921 = vmatprep.subr.mxu0 %v132
    %922 = vmatpush1.msra.mxu0 %v131
    %923 = vmatprep.subr.mxu0 %v136
    %924 = vmatpush1.msra.mxu0 %v135
    %925 = vmatprep.subr.mxu0 %v140
    %926 = vmatpush1.msra.mxu0 %v139
    %927 = vmatprep.subr.mxu0 %v144
    %928 = vmatpush1.msra.mxu0 %v143
    %929 = vmatprep.subr.mxu0 %v148
    %930 = vmatpush1.msra.mxu0 %v147
    %931 = vmatprep.subr.mxu0 %v152
    %932 = vmatpush1.msra.mxu0 %v151
    %933 = vmatprep.subr.mxu0 %v156
    %934 = vmatpush1.msra.mxu0 %v155
    %935 = vmatprep.subr.mxu0 %v160
    %936 = vmatpush1.msra.mxu0 %v159
    %937 = vmatprep.subr.mxu0 %v164
    %938 = vmatpush1.msra.mxu0 %v163
    %939 = vmatprep.subr.mxu0 %v168
    %940 = vmatpush1.msra.mxu0 %v167
    %941 = vmatprep.subr.mxu0 %v172
    %942 = vmatpush1.msra.mxu0 %v171
    %943 = vmatprep.subr.mxu0 %v176
    %944 = vmatpush1.msra.mxu0 %v175
    %945 = vmatprep.subr.mxu0 %v180
    %946 = vmatpush1.msra.mxu0 %v179
    %947 = vmatprep.subr.mxu0 %v184
    %948 = vmatpush1.msra.mxu0 %v183
    %949 = vmatprep.subr.mxu0 %v188
    %950 = vmatpush1.msra.mxu0 %v187
    %951 = vmatprep.subr.mxu0 %v192
    %952 = vmatpush1.msra.mxu0 %v191
    %953 = vmatprep.subr.mxu0 %v196
    %954 = vmatpush1.msra.mxu0 %v195
    %955 = vmatprep.subr.mxu0 %v200
    %956 = vmatpush1.msra.mxu0 %v199
    %957 = vmatprep.subr.mxu0 %v204
    %958 = vmatpush1.msra.mxu0 %v203
    %959 = vmatprep.mubr.f32.mxu0 %v70
    %960 = vmatmul.mubr.f32.gmra.mrb[0].mxu0 %v69
    %v961 = vpop.f32.mrb[0].mxu0
    %v962 = vadd.f32 %v602, %v961
    %v963 = vpop.f32.mrb[0].mxu0
    %v964 = vadd.f32 %v606, %v963
    %965 = vdwg.mxu0
    %966 = vmatprep.subr.mxu0 %v208
    %967 = vmatpush1.msra.mxu0 %v207
    %968 = vmatprep.subr.mxu0 %v212
    %969 = vmatpush1.msra.mxu0 %v211
    %970 = vmatprep.subr.mxu0 %v216
    %971 = vmatpush1.msra.mxu0 %v215
    %972 = vmatprep.subr.mxu0 %v220
    %973 = vmatpush1.msra.mxu0 %v219
    %974 = vmatprep.subr.mxu0 %v224
    %975 = vmatpush1.msra.mxu0 %v223
    %976 = vmatprep.subr.mxu0 %v228
    %977 = vmatpush1.msra.mxu0 %v227
    %978 = vmatprep.subr.mxu0 %v232
    %979 = vmatpush1.msra.mxu0 %v231
    %980 = vmatprep.subr.mxu0 %v236
    %981 = vmatpush1.msra.mxu0 %v235
    %982 = vmatprep.subr.mxu0 %v240
    %983 = vmatpush1.msra.mxu0 %v239
    %984 = vmatprep.subr.mxu0 %v244
    %985 = vmatpush1.msra.mxu0 %v243
    %986 = vmatprep.subr.mxu0 %v248
    %987 = vmatpush1.msra.mxu0 %v247
    %988 = vmatprep.subr.mxu0 %v252
    %989 = vmatpush1.msra.mxu0 %v251
    %990 = vmatprep.subr.mxu0 %v256
    %991 = vmatpush1.msra.mxu0 %v255
    %992 = vmatprep.subr.mxu0 %v260
    %993 = vmatpush1.msra.mxu0 %v259
    %994 = vmatprep.subr.mxu0 %v264
    %995 = vmatpush1.msra.mxu0 %v263
    %996 = vmatprep.subr.mxu0 %v268
    %997 = vmatpush1.msra.mxu0 %v267
    %998 = vmatprep.subr.mxu0 %v272
    %999 = vmatpush1.msra.mxu0 %v271
    %1000 = vmatprep.subr.mxu0 %v276
    %1001 = vmatpush1.msra.mxu0 %v275
    %1002 = vmatprep.subr.mxu0 %v280
    %1003 = vmatpush1.msra.mxu0 %v279
    %1004 = vmatprep.subr.mxu0 %v284
    %1005 = vmatpush1.msra.mxu0 %v283
    %1006 = vmatprep.subr.mxu0 %v288
    %1007 = vmatpush1.msra.mxu0 %v287
    %1008 = vmatprep.subr.mxu0 %v292
    %1009 = vmatpush1.msra.mxu0 %v291
    %1010 = vmatprep.subr.mxu0 %v296
    %1011 = vmatpush1.msra.mxu0 %v295
    %1012 = vmatprep.subr.mxu0 %v300
    %1013 = vmatpush1.msra.mxu0 %v299
    %1014 = vmatprep.subr.mxu0 %v304
    %1015 = vmatpush1.msra.mxu0 %v303
    %1016 = vmatprep.subr.mxu0 %v308
    %1017 = vmatpush1.msra.mxu0 %v307
    %1018 = vmatprep.subr.mxu0 %v312
    %1019 = vmatpush1.msra.mxu0 %v311
    %1020 = vmatprep.subr.mxu0 %v316
    %1021 = vmatpush1.msra.mxu0 %v315
    %1022 = vmatprep.subr.mxu0 %v320
    %1023 = vmatpush1.msra.mxu0 %v319
    %1024 = vmatprep.subr.mxu0 %v324
    %1025 = vmatpush1.msra.mxu0 %v323
    %1026 = vmatprep.subr.mxu0 %v328
    %1027 = vmatpush1.msra.mxu0 %v327
    %1028 = vmatprep.subr.mxu0 %v332
    %1029 = vmatpush1.msra.mxu0 %v331
    %1030 = vmatprep.mubr.f32.mxu0 %v72
    %1031 = vmatmul.mubr.f32.gmra.mrb[0].mxu0 %v71
    %v1032 = vpop.f32.mrb[0].mxu0
    %v1033 = vadd.f32 %v962, %v1032
    %v1034 = vpop.f32.mrb[0].mxu0
    %v1035 = vadd.f32 %v964, %v1034
    %1036 = vdwg.mxu0
    %1037 = vmatprep.subr.mxu0 %v336
    %1038 = vmatpush1.msra.mxu0 %v335
    %1039 = vmatprep.subr.mxu0 %v340
    %1040 = vmatpush1.msra.mxu0 %v339
    %1041 = vmatprep.subr.mxu0 %v344
    %1042 = vmatpush1.msra.mxu0 %v343
    %1043 = vmatprep.subr.mxu0 %v348
    %1044 = vmatpush1.msra.mxu0 %v347
    %1045 = vmatprep.subr.mxu0 %v352
    %1046 = vmatpush1.msra.mxu0 %v351
    %1047 = vmatprep.subr.mxu0 %v356
    %1048 = vmatpush1.msra.mxu0 %v355
    %1049 = vmatprep.subr.mxu0 %v360
    %1050 = vmatpush1.msra.mxu0 %v359
    %1051 = vmatprep.subr.mxu0 %v364
    %1052 = vmatpush1.msra.mxu0 %v363
    %1053 = vmatprep.subr.mxu0 %v368
    %1054 = vmatpush1.msra.mxu0 %v367
    %1055 = vmatprep.subr.mxu0 %v372
    %1056 = vmatpush1.msra.mxu0 %v371
    %1057 = vmatprep.subr.mxu0 %v376
    %1058 = vmatpush1.msra.mxu0 %v375
    %1059 = vmatprep.subr.mxu0 %v380
    %1060 = vmatpush1.msra.mxu0 %v379
    %1061 = vmatprep.subr.mxu0 %v384
    %1062 = vmatpush1.msra.mxu0 %v383
    %1063 = vmatprep.subr.mxu0 %v388
    %1064 = vmatpush1.msra.mxu0 %v387
    %1065 = vmatprep.subr.mxu0 %v392
    %1066 = vmatpush1.msra.mxu0 %v391
    %1067 = vmatprep.subr.mxu0 %v396
    %1068 = vmatpush1.msra.mxu0 %v395
    %1069 = vmatprep.subr.mxu0 %v400
    %1070 = vmatpush1.msra.mxu0 %v399
    %1071 = vmatprep.subr.mxu0 %v404
    %1072 = vmatpush1.msra.mxu0 %v403
    %1073 = vmatprep.subr.mxu0 %v408
    %1074 = vmatpush1.msra.mxu0 %v407
    %1075 = vmatprep.subr.mxu0 %v412
    %1076 = vmatpush1.msra.mxu0 %v411
    %1077 = vmatprep.subr.mxu0 %v416
    %1078 = vmatpush1.msra.mxu0 %v415
    %1079 = vmatprep.subr.mxu0 %v420
    %1080 = vmatpush1.msra.mxu0 %v419
    %1081 = vmatprep.subr.mxu0 %v424
    %1082 = vmatpush1.msra.mxu0 %v423
    %1083 = vmatprep.subr.mxu0 %v428
    %1084 = vmatpush1.msra.mxu0 %v427
    %1085 = vmatprep.subr.mxu0 %v432
    %1086 = vmatpush1.msra.mxu0 %v431
    %1087 = vmatprep.subr.mxu0 %v436
    %1088 = vmatpush1.msra.mxu0 %v435
    %1089 = vmatprep.subr.mxu0 %v440
    %1090 = vmatpush1.msra.mxu0 %v439
    %1091 = vmatprep.subr.mxu0 %v444
    %1092 = vmatpush1.msra.mxu0 %v443
    %1093 = vmatprep.subr.mxu0 %v448
    %1094 = vmatpush1.msra.mxu0 %v447
    %1095 = vmatprep.subr.mxu0 %v452
    %1096 = vmatpush1.msra.mxu0 %v451
    %1097 = vmatprep.subr.mxu0 %v456
    %1098 = vmatpush1.msra.mxu0 %v455
    %1099 = vmatprep.subr.mxu0 %v460
    %1100 = vmatpush1.msra.mxu0 %v459
    %1101 = vmatprep.mubr.f32.mxu0 %v74
    %1102 = vmatmul.mubr.f32.gmra.mrb[0].mxu0 %v73
    %v1103 = vpop.f32.mrb[0].mxu0
    %v1104 = vadd.f32 %v1033, %v1103
    %v1105 = vpop.f32.mrb[0].mxu0
    %v1106 = vadd.f32 %v1035, %v1105
    %1107 = vdwg.mxu0
    %1108 = vmatprep.subr.mxu0 %v464
    %1109 = vmatpush1.msra.mxu0 %v463
    %1110 = vmatprep.subr.mxu0 %v468
    %1111 = vmatpush1.msra.mxu0 %v467
    %1112 = vmatprep.subr.mxu0 %v472
    %1113 = vmatpush1.msra.mxu0 %v471
    %1114 = vmatprep.subr.mxu0 %v476
    %1115 = vmatpush1.msra.mxu0 %v475
    %1116 = vmatprep.subr.mxu0 %v480
    %1117 = vmatpush1.msra.mxu0 %v479
    %1118 = vmatprep.subr.mxu0 %v484
    %1119 = vmatpush1.msra.mxu0 %v483
    %1120 = vmatprep.subr.mxu0 %v488
    %1121 = vmatpush1.msra.mxu0 %v487
    %1122 = vmatprep.subr.mxu0 %v492
    %1123 = vmatpush1.msra.mxu0 %v491
    %1124 = vmatprep.subr.mxu0 %v496
    %1125 = vmatpush1.msra.mxu0 %v495
    %1126 = vmatprep.subr.mxu0 %v500
    %1127 = vmatpush1.msra.mxu0 %v499
    %1128 = vmatprep.subr.mxu0 %v504
    %1129 = vmatpush1.msra.mxu0 %v503
    %1130 = vmatprep.subr.mxu0 %v508
    %1131 = vmatpush1.msra.mxu0 %v507
    %1132 = vmatprep.subr.mxu0 %v512
    %1133 = vmatpush1.msra.mxu0 %v511
    %1134 = vmatprep.subr.mxu0 %v516
    %1135 = vmatpush1.msra.mxu0 %v515
    %1136 = vmatprep.subr.mxu0 %v520
    %1137 = vmatpush1.msra.mxu0 %v519
    %1138 = vmatprep.subr.mxu0 %v524
    %1139 = vmatpush1.msra.mxu0 %v523
    %1140 = vmatprep.subr.mxu0 %v528
    %1141 = vmatpush1.msra.mxu0 %v527
    %1142 = vmatprep.subr.mxu0 %v532
    %1143 = vmatpush1.msra.mxu0 %v531
    %1144 = vmatprep.subr.mxu0 %v536
    %1145 = vmatpush1.msra.mxu0 %v535
    %1146 = vmatprep.subr.mxu0 %v540
    %1147 = vmatpush1.msra.mxu0 %v539
    %1148 = vmatprep.subr.mxu0 %v544
    %1149 = vmatpush1.msra.mxu0 %v543
    %1150 = vmatprep.subr.mxu0 %v548
    %1151 = vmatpush1.msra.mxu0 %v547
    %1152 = vmatprep.subr.mxu0 %v552
    %1153 = vmatpush1.msra.mxu0 %v551
    %1154 = vmatprep.subr.mxu0 %v556
    %1155 = vmatpush1.msra.mxu0 %v555
    %1156 = vmatprep.subr.mxu0 %v560
    %1157 = vmatpush1.msra.mxu0 %v559
    %1158 = vmatprep.subr.mxu0 %v564
    %1159 = vmatpush1.msra.mxu0 %v563
    %1160 = vmatprep.subr.mxu0 %v568
    %1161 = vmatpush1.msra.mxu0 %v567
    %1162 = vmatprep.subr.mxu0 %v572
    %1163 = vmatpush1.msra.mxu0 %v571
    %1164 = vmatprep.subr.mxu0 %v576
    %1165 = vmatpush1.msra.mxu0 %v575
    %1166 = vmatprep.subr.mxu0 %v580
    %1167 = vmatpush1.msra.mxu0 %v579
    %1168 = vmatprep.subr.mxu0 %v584
    %1169 = vmatpush1.msra.mxu0 %v583
    %1170 = vmatprep.subr.mxu0 %v588
    %1171 = vmatpush1.msra.mxu0 %v587
    %1172 = vmatprep.mubr.f32.mxu0 %v76
    %1173 = vmatmul.mubr.f32.gmra.mrb[0].mxu0 %v75
    %v1174 = vpop.f32.mrb[0].mxu0
    %v1175 = vadd.f32 %v1104, %v1174
    %v1176 = vpop.f32.mrb[0].mxu0
    %v1177 = vadd.f32 %v1106, %v1176
    %1178 = vdwg.mxu0
    %v1179 = vxor.u32 %v891, 2147483648
    %v1180 = vxor.u32 %v893, 2147483648
    %v1181 = vxor.u32 %v1175, 2147483648
    %v1182 = vxor.u32 %v1177, 2147483648
    %v1183 = vmul.f32 %v1179, 1.442695
    %v1184 = vpow.pop %v1183
    %v1185 = vmul.f32 %v1180, 1.442695
    %v1186 = vpow.pop %v1185
    %v1187 = vmul.f32 %v1181, 1.442695
    %v1188 = vpow.pop %v1187
    %v1189 = vmul.f32 %v1182, 1.442695
    %v1190 = vpow.pop %v1189
    %v1191 = vadd.f32 %v1184, 1.0
    %v1192 = vadd.f32 %v1186, 1.0
    %v1193 = vadd.f32 %v1188, 1.0
    %v1194 = vadd.f32 %v1190, 1.0
    %v1195 = vrcp.pop %v1191
    %v1196 = vmul.f32 1.0, %v1195
    %v1197 = vrcp.pop %v1192
    %v1198 = vmul.f32 1.0, %v1197
    %v1199 = vrcp.pop %v1193
    %v1200 = vmul.f32 1.0, %v1199
    %v1201 = vrcp.pop %v1194
    %v1202 = vmul.f32 1.0, %v1201
    %v1203 = vld [vmem:[#allocation8] sm:$0xff]
    %v1204 = vld [vmem:[#allocation8 + $0x8] sm:$0xff]
    %v1205 = vld [vmem:[#allocation8 + $0x10] sm:$0xff]
    %v1206 = vld [vmem:[#allocation8 + $0x18] sm:$0xff]
    %v1207 = vld [vmem:[#allocation8 + $0x20] sm:$0xff]
    %v1208 = vld [vmem:[#allocation8 + $0x28] sm:$0xff]
    %v1209 = vld [vmem:[#allocation8 + $0x30] sm:$0xff]
    %v1210 = vld [vmem:[#allocation8 + $0x38] sm:$0xff]
    %v1211 = vld [vmem:[#allocation8 + $0x40] sm:$0xff]
    %v1212 = vld [vmem:[#allocation8 + $0x48] sm:$0xff]
    %v1213 = vld [vmem:[#allocation8 + $0x50] sm:$0xff]
    %v1214 = vld [vmem:[#allocation8 + $0x58] sm:$0xff]
    %v1215 = vld [vmem:[#allocation8 + $0x60] sm:$0xff]
    %v1216 = vld [vmem:[#allocation8 + $0x68] sm:$0xff]
    %v1217 = vld [vmem:[#allocation8 + $0x70] sm:$0xff]
    %v1218 = vld [vmem:[#allocation8 + $0x78] sm:$0xff]
    %v1219 = vld [vmem:[#allocation8 + $0x80] sm:$0xff]
    %v1220 = vld [vmem:[#allocation8 + $0x88] sm:$0xff]
    %v1221 = vld [vmem:[#allocation8 + $0x90] sm:$0xff]
    %v1222 = vld [vmem:[#allocation8 + $0x98] sm:$0xff]
    %v1223 = vld [vmem:[#allocation8 + $0xa0] sm:$0xff]
    %v1224 = vld [vmem:[#allocation8 + $0xa8] sm:$0xff]
    %v1225 = vld [vmem:[#allocation8 + $0xb0] sm:$0xff]
    %v1226 = vld [vmem:[#allocation8 + $0xb8] sm:$0xff]
    %v1227 = vld [vmem:[#allocation8 + $0xc0] sm:$0xff]
    %v1228 = vld [vmem:[#allocation8 + $0xc8] sm:$0xff]
    %v1229 = vld [vmem:[#allocation8 + $0xd0] sm:$0xff]
    %v1230 = vld [vmem:[#allocation8 + $0xd8] sm:$0xff]
    %v1231 = vld [vmem:[#allocation8 + $0xe0] sm:$0xff]
    %v1232 = vld [vmem:[#allocation8 + $0xe8] sm:$0xff]
    %v1233 = vld [vmem:[#allocation8 + $0xf0] sm:$0xff]
    %v1234 = vld [vmem:[#allocation8 + $0xf8] sm:$0xff]
    %v1235 = vld [vmem:[#allocation8 + $0x100] sm:$0xff]
    %v1236 = vld [vmem:[#allocation8 + $0x108] sm:$0xff]
    %v1237 = vld [vmem:[#allocation8 + $0x110] sm:$0xff]
    %v1238 = vld [vmem:[#allocation8 + $0x118] sm:$0xff]
    %v1239 = vld [vmem:[#allocation8 + $0x120] sm:$0xff]
    %v1240 = vld [vmem:[#allocation8 + $0x128] sm:$0xff]
    %v1241 = vld [vmem:[#allocation8 + $0x130] sm:$0xff]
    %v1242 = vld [vmem:[#allocation8 + $0x138] sm:$0xff]
    %v1243 = vld [vmem:[#allocation8 + $0x140] sm:$0xff]
    %v1244 = vld [vmem:[#allocation8 + $0x148] sm:$0xff]
    %v1245 = vld [vmem:[#allocation8 + $0x150] sm:$0xff]
    %v1246 = vld [vmem:[#allocation8 + $0x158] sm:$0xff]
    %v1247 = vld [vmem:[#allocation8 + $0x160] sm:$0xff]
    %v1248 = vld [vmem:[#allocation8 + $0x168] sm:$0xff]
    %v1249 = vld [vmem:[#allocation8 + $0x170] sm:$0xff]
    %v1250 = vld [vmem:[#allocation8 + $0x178] sm:$0xff]
    %v1251 = vld [vmem:[#allocation8 + $0x180] sm:$0xff]
    %v1252 = vld [vmem:[#allocation8 + $0x188] sm:$0xff]
    %v1253 = vld [vmem:[#allocation8 + $0x190] sm:$0xff]
    %v1254 = vld [vmem:[#allocation8 + $0x198] sm:$0xff]
    %v1255 = vld [vmem:[#allocation8 + $0x1a0] sm:$0xff]
    %v1256 = vld [vmem:[#allocation8 + $0x1a8] sm:$0xff]
    %v1257 = vld [vmem:[#allocation8 + $0x1b0] sm:$0xff]
    %v1258 = vld [vmem:[#allocation8 + $0x1b8] sm:$0xff]
    %v1259 = vld [vmem:[#allocation8 + $0x1c0] sm:$0xff]
    %v1260 = vld [vmem:[#allocation8 + $0x1c8] sm:$0xff]
    %v1261 = vld [vmem:[#allocation8 + $0x1d0] sm:$0xff]
    %v1262 = vld [vmem:[#allocation8 + $0x1d8] sm:$0xff]
    %v1263 = vld [vmem:[#allocation8 + $0x1e0] sm:$0xff]
    %v1264 = vld [vmem:[#allocation8 + $0x1e8] sm:$0xff]
    %v1265 = vld [vmem:[#allocation8 + $0x1f0] sm:$0xff]
    %v1266 = vld [vmem:[#allocation8 + $0x1f8] sm:$0xff]
    %v1267 = vld [vmem:[#allocation8 + $0x200] sm:$0xff]
    %v1268 = vld [vmem:[#allocation8 + $0x208] sm:$0xff]
    %v1269 = vld [vmem:[#allocation8 + $0x210] sm:$0xff]
    %v1270 = vld [vmem:[#allocation8 + $0x218] sm:$0xff]
    %v1271 = vld [vmem:[#allocation8 + $0x220] sm:$0xff]
    %v1272 = vld [vmem:[#allocation8 + $0x228] sm:$0xff]
    %v1273 = vld [vmem:[#allocation8 + $0x230] sm:$0xff]
    %v1274 = vld [vmem:[#allocation8 + $0x238] sm:$0xff]
    %v1275 = vld [vmem:[#allocation8 + $0x240] sm:$0xff]
    %v1276 = vld [vmem:[#allocation8 + $0x248] sm:$0xff]
    %v1277 = vld [vmem:[#allocation8 + $0x250] sm:$0xff]
    %v1278 = vld [vmem:[#allocation8 + $0x258] sm:$0xff]
    %v1279 = vld [vmem:[#allocation8 + $0x260] sm:$0xff]
    %v1280 = vld [vmem:[#allocation8 + $0x268] sm:$0xff]
    %v1281 = vld [vmem:[#allocation8 + $0x270] sm:$0xff]
    %v1282 = vld [vmem:[#allocation8 + $0x278] sm:$0xff]
    %v1283 = vld [vmem:[#allocation8 + $0x280] sm:$0xff]
    %v1284 = vld [vmem:[#allocation8 + $0x288] sm:$0xff]
    %v1285 = vld [vmem:[#allocation8 + $0x290] sm:$0xff]
    %v1286 = vld [vmem:[#allocation8 + $0x298] sm:$0xff]
    %v1287 = vld [vmem:[#allocation8 + $0x2a0] sm:$0xff]
    %v1288 = vld [vmem:[#allocation8 + $0x2a8] sm:$0xff]
    %v1289 = vld [vmem:[#allocation8 + $0x2b0] sm:$0xff]
    %v1290 = vld [vmem:[#allocation8 + $0x2b8] sm:$0xff]
    %v1291 = vld [vmem:[#allocation8 + $0x2c0] sm:$0xff]
    %v1292 = vld [vmem:[#allocation8 + $0x2c8] sm:$0xff]
    %v1293 = vld [vmem:[#allocation8 + $0x2d0] sm:$0xff]
    %v1294 = vld [vmem:[#allocation8 + $0x2d8] sm:$0xff]
    %v1295 = vld [vmem:[#allocation8 + $0x2e0] sm:$0xff]
    %v1296 = vld [vmem:[#allocation8 + $0x2e8] sm:$0xff]
    %v1297 = vld [vmem:[#allocation8 + $0x2f0] sm:$0xff]
    %v1298 = vld [vmem:[#allocation8 + $0x2f8] sm:$0xff]
    %v1299 = vld [vmem:[#allocation8 + $0x300] sm:$0xff]
    %v1300 = vld [vmem:[#allocation8 + $0x308] sm:$0xff]
    %v1301 = vld [vmem:[#allocation8 + $0x310] sm:$0xff]
    %v1302 = vld [vmem:[#allocation8 + $0x318] sm:$0xff]
    %v1303 = vld [vmem:[#allocation8 + $0x320] sm:$0xff]
    %v1304 = vld [vmem:[#allocation8 + $0x328] sm:$0xff]
    %v1305 = vld [vmem:[#allocation8 + $0x330] sm:$0xff]
    %v1306 = vld [vmem:[#allocation8 + $0x338] sm:$0xff]
    %v1307 = vld [vmem:[#allocation8 + $0x340] sm:$0xff]
    %v1308 = vld [vmem:[#allocation8 + $0x348] sm:$0xff]
    %v1309 = vld [vmem:[#allocation8 + $0x350] sm:$0xff]
    %v1310 = vld [vmem:[#allocation8 + $0x358] sm:$0xff]
    %v1311 = vld [vmem:[#allocation8 + $0x360] sm:$0xff]
    %v1312 = vld [vmem:[#allocation8 + $0x368] sm:$0xff]
    %v1313 = vld [vmem:[#allocation8 + $0x370] sm:$0xff]
    %v1314 = vld [vmem:[#allocation8 + $0x378] sm:$0xff]
    %v1315 = vld [vmem:[#allocation8 + $0x380] sm:$0xff]
    %v1316 = vld [vmem:[#allocation8 + $0x388] sm:$0xff]
    %v1317 = vld [vmem:[#allocation8 + $0x390] sm:$0xff]
    %v1318 = vld [vmem:[#allocation8 + $0x398] sm:$0xff]
    %v1319 = vld [vmem:[#allocation8 + $0x3a0] sm:$0xff]
    %v1320 = vld [vmem:[#allocation8 + $0x3a8] sm:$0xff]
    %v1321 = vld [vmem:[#allocation8 + $0x3b0] sm:$0xff]
    %v1322 = vld [vmem:[#allocation8 + $0x3b8] sm:$0xff]
    %v1323 = vld [vmem:[#allocation8 + $0x3c0] sm:$0xff]
    %v1324 = vld [vmem:[#allocation8 + $0x3c8] sm:$0xff]
    %v1325 = vld [vmem:[#allocation8 + $0x3d0] sm:$0xff]
    %v1326 = vld [vmem:[#allocation8 + $0x3d8] sm:$0xff]
    %v1327 = vld [vmem:[#allocation8 + $0x3e0] sm:$0xff]
    %v1328 = vld [vmem:[#allocation8 + $0x3e8] sm:$0xff]
    %v1329 = vld [vmem:[#allocation8 + $0x3f0] sm:$0xff]
    %v1330 = vld [vmem:[#allocation8 + $0x3f8] sm:$0xff]
    %v1331 = vld [vmem:[#allocation8 + $0x400] sm:$0xff]
    %v1332 = vld [vmem:[#allocation8 + $0x408] sm:$0xff]
    %v1333 = vld [vmem:[#allocation8 + $0x410] sm:$0xff]
    %v1334 = vld [vmem:[#allocation8 + $0x418] sm:$0xff]
    %v1335 = vld [vmem:[#allocation8 + $0x420] sm:$0xff]
    %v1336 = vld [vmem:[#allocation8 + $0x428] sm:$0xff]
    %v1337 = vld [vmem:[#allocation8 + $0x430] sm:$0xff]
    %v1338 = vld [vmem:[#allocation8 + $0x438] sm:$0xff]
    %v1339 = vld [vmem:[#allocation8 + $0x440] sm:$0xff]
    %v1340 = vld [vmem:[#allocation8 + $0x448] sm:$0xff]
    %v1341 = vld [vmem:[#allocation8 + $0x450] sm:$0xff]
    %v1342 = vld [vmem:[#allocation8 + $0x458] sm:$0xff]
    %v1343 = vld [vmem:[#allocation8 + $0x460] sm:$0xff]
    %v1344 = vld [vmem:[#allocation8 + $0x468] sm:$0xff]
    %v1345 = vld [vmem:[#allocation8 + $0x470] sm:$0xff]
    %v1346 = vld [vmem:[#allocation8 + $0x478] sm:$0xff]
    %v1347 = vld [vmem:[#allocation8 + $0x480] sm:$0xff]
    %v1348 = vld [vmem:[#allocation8 + $0x488] sm:$0xff]
    %v1349 = vld [vmem:[#allocation8 + $0x490] sm:$0xff]
    %v1350 = vld [vmem:[#allocation8 + $0x498] sm:$0xff]
    %v1351 = vld [vmem:[#allocation8 + $0x4a0] sm:$0xff]
    %v1352 = vld [vmem:[#allocation8 + $0x4a8] sm:$0xff]
    %v1353 = vld [vmem:[#allocation8 + $0x4b0] sm:$0xff]
    %v1354 = vld [vmem:[#allocation8 + $0x4b8] sm:$0xff]
    %v1355 = vld [vmem:[#allocation8 + $0x4c0] sm:$0xff]
    %v1356 = vld [vmem:[#allocation8 + $0x4c8] sm:$0xff]
    %v1357 = vld [vmem:[#allocation8 + $0x4d0] sm:$0xff]
    %v1358 = vld [vmem:[#allocation8 + $0x4d8] sm:$0xff]
    %v1359 = vld [vmem:[#allocation8 + $0x4e0] sm:$0xff]
    %v1360 = vld [vmem:[#allocation8 + $0x4e8] sm:$0xff]
    %v1361 = vld [vmem:[#allocation8 + $0x4f0] sm:$0xff]
    %v1362 = vld [vmem:[#allocation8 + $0x4f8] sm:$0xff]
    %v1363 = vld [vmem:[#allocation8 + $0x500] sm:$0xff]
    %v1364 = vld [vmem:[#allocation8 + $0x508] sm:$0xff]
    %v1365 = vld [vmem:[#allocation8 + $0x510] sm:$0xff]
    %v1366 = vld [vmem:[#allocation8 + $0x518] sm:$0xff]
    %v1367 = vld [vmem:[#allocation8 + $0x520] sm:$0xff]
    %v1368 = vld [vmem:[#allocation8 + $0x528] sm:$0xff]
    %v1369 = vld [vmem:[#allocation8 + $0x530] sm:$0xff]
    %v1370 = vld [vmem:[#allocation8 + $0x538] sm:$0xff]
    %v1371 = vld [vmem:[#allocation8 + $0x540] sm:$0xff]
    %v1372 = vld [vmem:[#allocation8 + $0x548] sm:$0xff]
    %v1373 = vld [vmem:[#allocation8 + $0x550] sm:$0xff]
    %v1374 = vld [vmem:[#allocation8 + $0x558] sm:$0xff]
    %v1375 = vld [vmem:[#allocation8 + $0x560] sm:$0xff]
    %v1376 = vld [vmem:[#allocation8 + $0x568] sm:$0xff]
    %v1377 = vld [vmem:[#allocation8 + $0x570] sm:$0xff]
    %v1378 = vld [vmem:[#allocation8 + $0x578] sm:$0xff]
    %v1379 = vld [vmem:[#allocation8 + $0x580] sm:$0xff]
    %v1380 = vld [vmem:[#allocation8 + $0x588] sm:$0xff]
    %v1381 = vld [vmem:[#allocation8 + $0x590] sm:$0xff]
    %v1382 = vld [vmem:[#allocation8 + $0x598] sm:$0xff]
    %v1383 = vld [vmem:[#allocation8 + $0x5a0] sm:$0xff]
    %v1384 = vld [vmem:[#allocation8 + $0x5a8] sm:$0xff]
    %v1385 = vld [vmem:[#allocation8 + $0x5b0] sm:$0xff]
    %v1386 = vld [vmem:[#allocation8 + $0x5b8] sm:$0xff]
    %v1387 = vld [vmem:[#allocation8 + $0x5c0] sm:$0xff]
    %v1388 = vld [vmem:[#allocation8 + $0x5c8] sm:$0xff]
    %v1389 = vld [vmem:[#allocation8 + $0x5d0] sm:$0xff]
    %v1390 = vld [vmem:[#allocation8 + $0x5d8] sm:$0xff]
    %v1391 = vld [vmem:[#allocation8 + $0x5e0] sm:$0xff]
    %v1392 = vld [vmem:[#allocation8 + $0x5e8] sm:$0xff]
    %v1393 = vld [vmem:[#allocation8 + $0x5f0] sm:$0xff]
    %v1394 = vld [vmem:[#allocation8 + $0x5f8] sm:$0xff]
    %v1395 = vld [vmem:[#allocation8 + $0x600] sm:$0xff]
    %v1396 = vld [vmem:[#allocation8 + $0x608] sm:$0xff]
    %v1397 = vld [vmem:[#allocation8 + $0x610] sm:$0xff]
    %v1398 = vld [vmem:[#allocation8 + $0x618] sm:$0xff]
    %v1399 = vld [vmem:[#allocation8 + $0x620] sm:$0xff]
    %v1400 = vld [vmem:[#allocation8 + $0x628] sm:$0xff]
    %v1401 = vld [vmem:[#allocation8 + $0x630] sm:$0xff]
    %v1402 = vld [vmem:[#allocation8 + $0x638] sm:$0xff]
    %v1403 = vld [vmem:[#allocation8 + $0x640] sm:$0xff]
    %v1404 = vld [vmem:[#allocation8 + $0x648] sm:$0xff]
    %v1405 = vld [vmem:[#allocation8 + $0x650] sm:$0xff]
    %v1406 = vld [vmem:[#allocation8 + $0x658] sm:$0xff]
    %v1407 = vld [vmem:[#allocation8 + $0x660] sm:$0xff]
    %v1408 = vld [vmem:[#allocation8 + $0x668] sm:$0xff]
    %v1409 = vld [vmem:[#allocation8 + $0x670] sm:$0xff]
    %v1410 = vld [vmem:[#allocation8 + $0x678] sm:$0xff]
    %v1411 = vld [vmem:[#allocation8 + $0x680] sm:$0xff]
    %v1412 = vld [vmem:[#allocation8 + $0x688] sm:$0xff]
    %v1413 = vld [vmem:[#allocation8 + $0x690] sm:$0xff]
    %v1414 = vld [vmem:[#allocation8 + $0x698] sm:$0xff]
    %v1415 = vld [vmem:[#allocation8 + $0x6a0] sm:$0xff]
    %v1416 = vld [vmem:[#allocation8 + $0x6a8] sm:$0xff]
    %v1417 = vld [vmem:[#allocation8 + $0x6b0] sm:$0xff]
    %v1418 = vld [vmem:[#allocation8 + $0x6b8] sm:$0xff]
    %v1419 = vld [vmem:[#allocation8 + $0x6c0] sm:$0xff]
    %v1420 = vld [vmem:[#allocation8 + $0x6c8] sm:$0xff]
    %v1421 = vld [vmem:[#allocation8 + $0x6d0] sm:$0xff]
    %v1422 = vld [vmem:[#allocation8 + $0x6d8] sm:$0xff]
    %v1423 = vld [vmem:[#allocation8 + $0x6e0] sm:$0xff]
    %v1424 = vld [vmem:[#allocation8 + $0x6e8] sm:$0xff]
    %v1425 = vld [vmem:[#allocation8 + $0x6f0] sm:$0xff]
    %v1426 = vld [vmem:[#allocation8 + $0x6f8] sm:$0xff]
    %v1427 = vld [vmem:[#allocation8 + $0x700] sm:$0xff]
    %v1428 = vld [vmem:[#allocation8 + $0x708] sm:$0xff]
    %v1429 = vld [vmem:[#allocation8 + $0x710] sm:$0xff]
    %v1430 = vld [vmem:[#allocation8 + $0x718] sm:$0xff]
    %v1431 = vld [vmem:[#allocation8 + $0x720] sm:$0xff]
    %v1432 = vld [vmem:[#allocation8 + $0x728] sm:$0xff]
    %v1433 = vld [vmem:[#allocation8 + $0x730] sm:$0xff]
    %v1434 = vld [vmem:[#allocation8 + $0x738] sm:$0xff]
    %v1435 = vld [vmem:[#allocation8 + $0x740] sm:$0xff]
    %v1436 = vld [vmem:[#allocation8 + $0x748] sm:$0xff]
    %v1437 = vld [vmem:[#allocation8 + $0x750] sm:$0xff]
    %v1438 = vld [vmem:[#allocation8 + $0x758] sm:$0xff]
    %v1439 = vld [vmem:[#allocation8 + $0x760] sm:$0xff]
    %v1440 = vld [vmem:[#allocation8 + $0x768] sm:$0xff]
    %v1441 = vld [vmem:[#allocation8 + $0x770] sm:$0xff]
    %v1442 = vld [vmem:[#allocation8 + $0x778] sm:$0xff]
    %v1443 = vld [vmem:[#allocation8 + $0x780] sm:$0xff]
    %v1444 = vld [vmem:[#allocation8 + $0x788] sm:$0xff]
    %v1445 = vld [vmem:[#allocation8 + $0x790] sm:$0xff]
    %v1446 = vld [vmem:[#allocation8 + $0x798] sm:$0xff]
    %v1447 = vld [vmem:[#allocation8 + $0x7a0] sm:$0xff]
    %v1448 = vld [vmem:[#allocation8 + $0x7a8] sm:$0xff]
    %v1449 = vld [vmem:[#allocation8 + $0x7b0] sm:$0xff]
    %v1450 = vld [vmem:[#allocation8 + $0x7b8] sm:$0xff]
    %v1451 = vld [vmem:[#allocation8 + $0x7c0] sm:$0xff]
    %v1452 = vld [vmem:[#allocation8 + $0x7c8] sm:$0xff]
    %v1453 = vld [vmem:[#allocation8 + $0x7d0] sm:$0xff]
    %v1454 = vld [vmem:[#allocation8 + $0x7d8] sm:$0xff]
    %v1455 = vld [vmem:[#allocation8 + $0x7e0] sm:$0xff]
    %v1456 = vld [vmem:[#allocation8 + $0x7e8] sm:$0xff]
    %v1457 = vld [vmem:[#allocation8 + $0x7f0] sm:$0xff]
    %v1458 = vld [vmem:[#allocation8 + $0x7f8] sm:$0xff]
    %v1459 = vld [vmem:[#allocation8 + $0x800] sm:$0xff]
    %v1460 = vld [vmem:[#allocation8 + $0x808] sm:$0xff]
    %v1461 = vld [vmem:[#allocation8 + $0x810] sm:$0xff]
    %v1462 = vld [vmem:[#allocation8 + $0x818] sm:$0xff]
    %v1463 = vld [vmem:[#allocation8 + $0x820] sm:$0xff]
    %v1464 = vld [vmem:[#allocation8 + $0x828] sm:$0xff]
    %v1465 = vld [vmem:[#allocation8 + $0x830] sm:$0xff]
    %v1466 = vld [vmem:[#allocation8 + $0x838] sm:$0xff]
    %v1467 = vld [vmem:[#allocation8 + $0x840] sm:$0xff]
    %v1468 = vld [vmem:[#allocation8 + $0x848] sm:$0xff]
    %v1469 = vld [vmem:[#allocation8 + $0x850] sm:$0xff]
    %v1470 = vld [vmem:[#allocation8 + $0x858] sm:$0xff]
    %v1471 = vld [vmem:[#allocation8 + $0x860] sm:$0xff]
    %v1472 = vld [vmem:[#allocation8 + $0x868] sm:$0xff]
    %v1473 = vld [vmem:[#allocation8 + $0x870] sm:$0xff]
    %v1474 = vld [vmem:[#allocation8 + $0x878] sm:$0xff]
    %v1475 = vld [vmem:[#allocation8 + $0x880] sm:$0xff]
    %v1476 = vld [vmem:[#allocation8 + $0x888] sm:$0xff]
    %v1477 = vld [vmem:[#allocation8 + $0x890] sm:$0xff]
    %v1478 = vld [vmem:[#allocation8 + $0x898] sm:$0xff]
    %v1479 = vld [vmem:[#allocation8 + $0x8a0] sm:$0xff]
    %v1480 = vld [vmem:[#allocation8 + $0x8a8] sm:$0xff]
    %v1481 = vld [vmem:[#allocation8 + $0x8b0] sm:$0xff]
    %v1482 = vld [vmem:[#allocation8 + $0x8b8] sm:$0xff]
    %v1483 = vld [vmem:[#allocation8 + $0x8c0] sm:$0xff]
    %v1484 = vld [vmem:[#allocation8 + $0x8c8] sm:$0xff]
    %v1485 = vld [vmem:[#allocation8 + $0x8d0] sm:$0xff]
    %v1486 = vld [vmem:[#allocation8 + $0x8d8] sm:$0xff]
    %v1487 = vld [vmem:[#allocation8 + $0x8e0] sm:$0xff]
    %v1488 = vld [vmem:[#allocation8 + $0x8e8] sm:$0xff]
    %v1489 = vld [vmem:[#allocation8 + $0x8f0] sm:$0xff]
    %v1490 = vld [vmem:[#allocation8 + $0x8f8] sm:$0xff]
    %v1491 = vld [vmem:[#allocation8 + $0x900] sm:$0xff]
    %v1492 = vld [vmem:[#allocation8 + $0x908] sm:$0xff]
    %v1493 = vld [vmem:[#allocation8 + $0x910] sm:$0xff]
    %v1494 = vld [vmem:[#allocation8 + $0x918] sm:$0xff]
    %v1495 = vld [vmem:[#allocation8 + $0x920] sm:$0xff]
    %v1496 = vld [vmem:[#allocation8 + $0x928] sm:$0xff]
    %v1497 = vld [vmem:[#allocation8 + $0x930] sm:$0xff]
    %v1498 = vld [vmem:[#allocation8 + $0x938] sm:$0xff]
    %v1499 = vld [vmem:[#allocation8 + $0x940] sm:$0xff]
    %v1500 = vld [vmem:[#allocation8 + $0x948] sm:$0xff]
    %v1501 = vld [vmem:[#allocation8 + $0x950] sm:$0xff]
    %v1502 = vld [vmem:[#allocation8 + $0x958] sm:$0xff]
    %v1503 = vld [vmem:[#allocation8 + $0x960] sm:$0xff]
    %v1504 = vld [vmem:[#allocation8 + $0x968] sm:$0xff]
    %v1505 = vld [vmem:[#allocation8 + $0x970] sm:$0xff]
    %v1506 = vld [vmem:[#allocation8 + $0x978] sm:$0xff]
    %v1507 = vld [vmem:[#allocation8 + $0x980] sm:$0xff]
    %v1508 = vld [vmem:[#allocation8 + $0x988] sm:$0xff]
    %v1509 = vld [vmem:[#allocation8 + $0x990] sm:$0xff]
    %v1510 = vld [vmem:[#allocation8 + $0x998] sm:$0xff]
    %v1511 = vld [vmem:[#allocation8 + $0x9a0] sm:$0xff]
    %v1512 = vld [vmem:[#allocation8 + $0x9a8] sm:$0xff]
    %v1513 = vld [vmem:[#allocation8 + $0x9b0] sm:$0xff]
    %v1514 = vld [vmem:[#allocation8 + $0x9b8] sm:$0xff]
    %v1515 = vld [vmem:[#allocation8 + $0x9c0] sm:$0xff]
    %v1516 = vld [vmem:[#allocation8 + $0x9c8] sm:$0xff]
    %v1517 = vld [vmem:[#allocation8 + $0x9d0] sm:$0xff]
    %v1518 = vld [vmem:[#allocation8 + $0x9d8] sm:$0xff]
    %v1519 = vld [vmem:[#allocation8 + $0x9e0] sm:$0xff]
    %v1520 = vld [vmem:[#allocation8 + $0x9e8] sm:$0xff]
    %v1521 = vld [vmem:[#allocation8 + $0x9f0] sm:$0xff]
    %v1522 = vld [vmem:[#allocation8 + $0x9f8] sm:$0xff]
    %1523 = vmatprep.subr.mxu0 %v1204
    %1524 = vmatpush1.msra.mxu0 %v1203
    %1525 = vmatprep.subr.mxu0 %v1209
    %1526 = vmatpush1.msra.mxu0 %v1208
    %1527 = vmatprep.subr.mxu0 %v1214
    %1528 = vmatpush1.msra.mxu0 %v1213
    %1529 = vmatprep.subr.mxu0 %v1219
    %1530 = vmatpush1.msra.mxu0 %v1218
    %1531 = vmatprep.subr.mxu0 %v1224
    %1532 = vmatpush1.msra.mxu0 %v1223
    %1533 = vmatprep.subr.mxu0 %v1229
    %1534 = vmatpush1.msra.mxu0 %v1228
    %1535 = vmatprep.subr.mxu0 %v1234
    %1536 = vmatpush1.msra.mxu0 %v1233
    %1537 = vmatprep.subr.mxu0 %v1239
    %1538 = vmatpush1.msra.mxu0 %v1238
    %1539 = vmatprep.subr.mxu0 %v1244
    %1540 = vmatpush1.msra.mxu0 %v1243
    %1541 = vmatprep.subr.mxu0 %v1249
    %1542 = vmatpush1.msra.mxu0 %v1248
    %1543 = vmatprep.subr.mxu0 %v1254
    %1544 = vmatpush1.msra.mxu0 %v1253
    %1545 = vmatprep.subr.mxu0 %v1259
    %1546 = vmatpush1.msra.mxu0 %v1258
    %1547 = vmatprep.subr.mxu0 %v1264
    %1548 = vmatpush1.msra.mxu0 %v1263
    %1549 = vmatprep.subr.mxu0 %v1269
    %1550 = vmatpush1.msra.mxu0 %v1268
    %1551 = vmatprep.subr.mxu0 %v1274
    %1552 = vmatpush1.msra.mxu0 %v1273
    %1553 = vmatprep.subr.mxu0 %v1279
    %1554 = vmatpush1.msra.mxu0 %v1278
    %1555 = vmatprep.subr.mxu0 %v1284
    %1556 = vmatpush1.msra.mxu0 %v1283
    %1557 = vmatprep.subr.mxu0 %v1289
    %1558 = vmatpush1.msra.mxu0 %v1288
    %1559 = vmatprep.subr.mxu0 %v1294
    %1560 = vmatpush1.msra.mxu0 %v1293
    %1561 = vmatprep.subr.mxu0 %v1299
    %1562 = vmatpush1.msra.mxu0 %v1298
    %1563 = vmatprep.subr.mxu0 %v1304
    %1564 = vmatpush1.msra.mxu0 %v1303
    %1565 = vmatprep.subr.mxu0 %v1309
    %1566 = vmatpush1.msra.mxu0 %v1308
    %1567 = vmatprep.subr.mxu0 %v1314
    %1568 = vmatpush1.msra.mxu0 %v1313
    %1569 = vmatprep.subr.mxu0 %v1319
    %1570 = vmatpush1.msra.mxu0 %v1318
    %1571 = vmatprep.subr.mxu0 %v1324
    %1572 = vmatpush1.msra.mxu0 %v1323
    %1573 = vmatprep.subr.mxu0 %v1329
    %1574 = vmatpush1.msra.mxu0 %v1328
    %1575 = vmatprep.subr.mxu0 %v1334
    %1576 = vmatpush1.msra.mxu0 %v1333
    %1577 = vmatprep.subr.mxu0 %v1339
    %1578 = vmatpush1.msra.mxu0 %v1338
    %1579 = vmatprep.subr.mxu0 %v1344
    %1580 = vmatpush1.msra.mxu0 %v1343
    %1581 = vmatprep.subr.mxu0 %v1349
    %1582 = vmatpush1.msra.mxu0 %v1348
    %1583 = vmatprep.subr.mxu0 %v1354
    %1584 = vmatpush1.msra.mxu0 %v1353
    %1585 = vmatprep.subr.mxu0 %v1359
    %1586 = vmatpush1.msra.mxu0 %v1358
    %1587 = vmatprep.mubr.f32.mxu0 %v1198
    %1588 = vmatmul.mubr.f32.gmra.mrb[0].mxu0 %v1196
    %v1589 = vpop.f32.mrb[0].mxu0
    %v1590 = vadd.f32 0.0, %v1589
    %v1591 = vpop.f32.mrb[0].mxu0
    %v1592 = vadd.f32 0.0, %v1591
    %1593 = vdwg.mxu0
    %1594 = vmatprep.subr.mxu0 %v1364
    %1595 = vmatpush1.msra.mxu0 %v1363
    %1596 = vmatprep.subr.mxu0 %v1369
    %1597 = vmatpush1.msra.mxu0 %v1368
    %1598 = vmatprep.subr.mxu0 %v1374
    %1599 = vmatpush1.msra.mxu0 %v1373
    %1600 = vmatprep.subr.mxu0 %v1379
    %1601 = vmatpush1.msra.mxu0 %v1378
    %1602 = vmatprep.subr.mxu0 %v1384
    %1603 = vmatpush1.msra.mxu0 %v1383
    %1604 = vmatprep.subr.mxu0 %v1389
    %1605 = vmatpush1.msra.mxu0 %v1388
    %1606 = vmatprep.subr.mxu0 %v1394
    %1607 = vmatpush1.msra.mxu0 %v1393
    %1608 = vmatprep.subr.mxu0 %v1399
    %1609 = vmatpush1.msra.mxu0 %v1398
    %1610 = vmatprep.subr.mxu0 %v1404
    %1611 = vmatpush1.msra.mxu0 %v1403
    %1612 = vmatprep.subr.mxu0 %v1409
    %1613 = vmatpush1.msra.mxu0 %v1408
    %1614 = vmatprep.subr.mxu0 %v1414
    %1615 = vmatpush1.msra.mxu0 %v1413
    %1616 = vmatprep.subr.mxu0 %v1419
    %1617 = vmatpush1.msra.mxu0 %v1418
    %1618 = vmatprep.subr.mxu0 %v1424
    %1619 = vmatpush1.msra.mxu0 %v1423
    %1620 = vmatprep.subr.mxu0 %v1429
    %1621 = vmatpush1.msra.mxu0 %v1428
    %1622 = vmatprep.subr.mxu0 %v1434
    %1623 = vmatpush1.msra.mxu0 %v1433
    %1624 = vmatprep.subr.mxu0 %v1439
    %1625 = vmatpush1.msra.mxu0 %v1438
    %1626 = vmatprep.subr.mxu0 %v1444
    %1627 = vmatpush1.msra.mxu0 %v1443
    %1628 = vmatprep.subr.mxu0 %v1449
    %1629 = vmatpush1.msra.mxu0 %v1448
    %1630 = vmatprep.subr.mxu0 %v1454
    %1631 = vmatpush1.msra.mxu0 %v1453
    %1632 = vmatprep.subr.mxu0 %v1459
    %1633 = vmatpush1.msra.mxu0 %v1458
    %1634 = vmatprep.subr.mxu0 %v1464
    %1635 = vmatpush1.msra.mxu0 %v1463
    %1636 = vmatprep.subr.mxu0 %v1469
    %1637 = vmatpush1.msra.mxu0 %v1468
    %1638 = vmatprep.subr.mxu0 %v1474
    %1639 = vmatpush1.msra.mxu0 %v1473
    %1640 = vmatprep.subr.mxu0 %v1479
    %1641 = vmatpush1.msra.mxu0 %v1478
    %1642 = vmatprep.subr.mxu0 %v1484
    %1643 = vmatpush1.msra.mxu0 %v1483
    %1644 = vmatprep.subr.mxu0 %v1489
    %1645 = vmatpush1.msra.mxu0 %v1488
    %1646 = vmatprep.subr.mxu0 %v1494
    %1647 = vmatpush1.msra.mxu0 %v1493
    %1648 = vmatprep.subr.mxu0 %v1499
    %1649 = vmatpush1.msra.mxu0 %v1498
    %1650 = vmatprep.subr.mxu0 %v1504
    %1651 = vmatpush1.msra.mxu0 %v1503
    %1652 = vmatprep.subr.mxu0 %v1509
    %1653 = vmatpush1.msra.mxu0 %v1508
    %1654 = vmatprep.subr.mxu0 %v1514
    %1655 = vmatpush1.msra.mxu0 %v1513
    %1656 = vmatprep.subr.mxu0 %v1519
    %1657 = vmatpush1.msra.mxu0 %v1518
    %1658 = vmatprep.mubr.f32.mxu0 %v1202
    %1659 = vmatmul.mubr.f32.gmra.mrb[0].mxu0 %v1200
    %v1660 = vpop.f32.mrb[0].mxu0
    %v1661 = vadd.f32 %v1590, %v1660
    %v1662 = vpop.f32.mrb[0].mxu0
    %v1663 = vadd.f32 %v1592, %v1662
    %1664 = vdwg.mxu0
    %1665 = vmatprep.subr.mxu0 %v1206
    %1666 = vmatpush1.msra.mxu0 %v1205
    %1667 = vmatprep.subr.mxu0 %v1211
    %1668 = vmatpush1.msra.mxu0 %v1210
    %1669 = vmatprep.subr.mxu0 %v1216
    %1670 = vmatpush1.msra.mxu0 %v1215
    %1671 = vmatprep.subr.mxu0 %v1221
    %1672 = vmatpush1.msra.mxu0 %v1220
    %1673 = vmatprep.subr.mxu0 %v1226
    %1674 = vmatpush1.msra.mxu0 %v1225
    %1675 = vmatprep.subr.mxu0 %v1231
    %1676 = vmatpush1.msra.mxu0 %v1230
    %1677 = vmatprep.subr.mxu0 %v1236
    %1678 = vmatpush1.msra.mxu0 %v1235
    %1679 = vmatprep.subr.mxu0 %v1241
    %1680 = vmatpush1.msra.mxu0 %v1240
    %1681 = vmatprep.subr.mxu0 %v1246
    %1682 = vmatpush1.msra.mxu0 %v1245
    %1683 = vmatprep.subr.mxu0 %v1251
    %1684 = vmatpush1.msra.mxu0 %v1250
    %1685 = vmatprep.subr.mxu0 %v1256
    %1686 = vmatpush1.msra.mxu0 %v1255
    %1687 = vmatprep.subr.mxu0 %v1261
    %1688 = vmatpush1.msra.mxu0 %v1260
    %1689 = vmatprep.subr.mxu0 %v1266
    %1690 = vmatpush1.msra.mxu0 %v1265
    %1691 = vmatprep.subr.mxu0 %v1271
    %1692 = vmatpush1.msra.mxu0 %v1270
    %1693 = vmatprep.subr.mxu0 %v1276
    %1694 = vmatpush1.msra.mxu0 %v1275
    %1695 = vmatprep.subr.mxu0 %v1281
    %1696 = vmatpush1.msra.mxu0 %v1280
    %1697 = vmatprep.subr.mxu0 %v1286
    %1698 = vmatpush1.msra.mxu0 %v1285
    %1699 = vmatprep.subr.mxu0 %v1291
    %1700 = vmatpush1.msra.mxu0 %v1290
    %1701 = vmatprep.subr.mxu0 %v1296
    %1702 = vmatpush1.msra.mxu0 %v1295
    %1703 = vmatprep.subr.mxu0 %v1301
    %1704 = vmatpush1.msra.mxu0 %v1300
    %1705 = vmatprep.subr.mxu0 %v1306
    %1706 = vmatpush1.msra.mxu0 %v1305
    %1707 = vmatprep.subr.mxu0 %v1311
    %1708 = vmatpush1.msra.mxu0 %v1310
    %1709 = vmatprep.subr.mxu0 %v1316
    %1710 = vmatpush1.msra.mxu0 %v1315
    %1711 = vmatprep.subr.mxu0 %v1321
    %1712 = vmatpush1.msra.mxu0 %v1320
    %1713 = vmatprep.subr.mxu0 %v1326
    %1714 = vmatpush1.msra.mxu0 %v1325
    %1715 = vmatprep.subr.mxu0 %v1331
    %1716 = vmatpush1.msra.mxu0 %v1330
    %1717 = vmatprep.subr.mxu0 %v1336
    %1718 = vmatpush1.msra.mxu0 %v1335
    %1719 = vmatprep.subr.mxu0 %v1341
    %1720 = vmatpush1.msra.mxu0 %v1340
    %1721 = vmatprep.subr.mxu0 %v1346
    %1722 = vmatpush1.msra.mxu0 %v1345
    %1723 = vmatprep.subr.mxu0 %v1351
    %1724 = vmatpush1.msra.mxu0 %v1350
    %1725 = vmatprep.subr.mxu0 %v1356
    %1726 = vmatpush1.msra.mxu0 %v1355
    %1727 = vmatprep.subr.mxu0 %v1361
    %1728 = vmatpush1.msra.mxu0 %v1360
    %1729 = vmatprep.mubr.f32.mxu0 %v1198
    %1730 = vmatmul.mubr.f32.gmra.mrb[0].mxu0 %v1196
    %v1731 = vpop.f32.mrb[0].mxu0
    %v1732 = vadd.f32 0.0, %v1731
    %v1733 = vpop.f32.mrb[0].mxu0
    %v1734 = vadd.f32 0.0, %v1733
    %1735 = vdwg.mxu0
    %1736 = vmatprep.subr.mxu0 %v1366
    %1737 = vmatpush1.msra.mxu0 %v1365
    %1738 = vmatprep.subr.mxu0 %v1371
    %1739 = vmatpush1.msra.mxu0 %v1370
    %1740 = vmatprep.subr.mxu0 %v1376
    %1741 = vmatpush1.msra.mxu0 %v1375
    %1742 = vmatprep.subr.mxu0 %v1381
    %1743 = vmatpush1.msra.mxu0 %v1380
    %1744 = vmatprep.subr.mxu0 %v1386
    %1745 = vmatpush1.msra.mxu0 %v1385
    %1746 = vmatprep.subr.mxu0 %v1391
    %1747 = vmatpush1.msra.mxu0 %v1390
    %1748 = vmatprep.subr.mxu0 %v1396
    %1749 = vmatpush1.msra.mxu0 %v1395
    %1750 = vmatprep.subr.mxu0 %v1401
    %1751 = vmatpush1.msra.mxu0 %v1400
    %1752 = vmatprep.subr.mxu0 %v1406
    %1753 = vmatpush1.msra.mxu0 %v1405
    %1754 = vmatprep.subr.mxu0 %v1411
    %1755 = vmatpush1.msra.mxu0 %v1410
    %1756 = vmatprep.subr.mxu0 %v1416
    %1757 = vmatpush1.msra.mxu0 %v1415
    %1758 = vmatprep.subr.mxu0 %v1421
    %1759 = vmatpush1.msra.mxu0 %v1420
    %1760 = vmatprep.subr.mxu0 %v1426
    %1761 = vmatpush1.msra.mxu0 %v1425
    %1762 = vmatprep.subr.mxu0 %v1431
    %1763 = vmatpush1.msra.mxu0 %v1430
    %1764 = vmatprep.subr.mxu0 %v1436
    %1765 = vmatpush1.msra.mxu0 %v1435
    %1766 = vmatprep.subr.mxu0 %v1441
    %1767 = vmatpush1.msra.mxu0 %v1440
    %1768 = vmatprep.subr.mxu0 %v1446
    %1769 = vmatpush1.msra.mxu0 %v1445
    %1770 = vmatprep.subr.mxu0 %v1451
    %1771 = vmatpush1.msra.mxu0 %v1450
    %1772 = vmatprep.subr.mxu0 %v1456
    %1773 = vmatpush1.msra.mxu0 %v1455
    %1774 = vmatprep.subr.mxu0 %v1461
    %1775 = vmatpush1.msra.mxu0 %v1460
    %1776 = vmatprep.subr.mxu0 %v1466
    %1777 = vmatpush1.msra.mxu0 %v1465
    %1778 = vmatprep.subr.mxu0 %v1471
    %1779 = vmatpush1.msra.mxu0 %v1470
    %1780 = vmatprep.subr.mxu0 %v1476
    %1781 = vmatpush1.msra.mxu0 %v1475
    %1782 = vmatprep.subr.mxu0 %v1481
    %1783 = vmatpush1.msra.mxu0 %v1480
    %1784 = vmatprep.subr.mxu0 %v1486
    %1785 = vmatpush1.msra.mxu0 %v1485
    %1786 = vmatprep.subr.mxu0 %v1491
    %1787 = vmatpush1.msra.mxu0 %v1490
    %1788 = vmatprep.subr.mxu0 %v1496
    %1789 = vmatpush1.msra.mxu0 %v1495
    %1790 = vmatprep.subr.mxu0 %v1501
    %1791 = vmatpush1.msra.mxu0 %v1500
    %1792 = vmatprep.subr.mxu0 %v1506
    %1793 = vmatpush1.msra.mxu0 %v1505
    %1794 = vmatprep.subr.mxu0 %v1511
    %1795 = vmatpush1.msra.mxu0 %v1510
    %1796 = vmatprep.subr.mxu0 %v1516
    %1797 = vmatpush1.msra.mxu0 %v1515
    %1798 = vmatprep.subr.mxu0 %v1521
    %1799 = vmatpush1.msra.mxu0 %v1520
    %1800 = vmatprep.mubr.f32.mxu0 %v1202
    %1801 = vmatmul.mubr.f32.gmra.mrb[0].mxu0 %v1200
    %v1802 = vpop.f32.mrb[0].mxu0
    %v1803 = vadd.f32 %v1732, %v1802
    %v1804 = vpop.f32.mrb[0].mxu0
    %v1805 = vadd.f32 %v1734, %v1804
    %1806 = vdwg.mxu0
    %1807 = vmatprep.subr.mxu0 0.0
    %1808 = vmatpush1.msra.mxu0 %v1207
    %1809 = vmatprep.subr.mxu0 0.0
    %1810 = vmatpush1.msra.mxu0 %v1212
    %1811 = vmatprep.subr.mxu0 0.0
    %1812 = vmatpush1.msra.mxu0 %v1217
    %1813 = vmatprep.subr.mxu0 0.0
    %1814 = vmatpush1.msra.mxu0 %v1222
    %1815 = vmatprep.subr.mxu0 0.0
    %1816 = vmatpush1.msra.mxu0 %v1227
    %1817 = vmatprep.subr.mxu0 0.0
    %1818 = vmatpush1.msra.mxu0 %v1232
    %1819 = vmatprep.subr.mxu0 0.0
    %1820 = vmatpush1.msra.mxu0 %v1237
    %1821 = vmatprep.subr.mxu0 0.0
    %1822 = vmatpush1.msra.mxu0 %v1242
    %1823 = vmatprep.subr.mxu0 0.0
    %1824 = vmatpush1.msra.mxu0 %v1247
    %1825 = vmatprep.subr.mxu0 0.0
    %1826 = vmatpush1.msra.mxu0 %v1252
    %1827 = vmatprep.subr.mxu0 0.0
    %1828 = vmatpush1.msra.mxu0 %v1257
    %1829 = vmatprep.subr.mxu0 0.0
    %1830 = vmatpush1.msra.mxu0 %v1262
    %1831 = vmatprep.subr.mxu0 0.0
    %1832 = vmatpush1.msra.mxu0 %v1267
    %1833 = vmatprep.subr.mxu0 0.0
    %1834 = vmatpush1.msra.mxu0 %v1272
    %1835 = vmatprep.subr.mxu0 0.0
    %1836 = vmatpush1.msra.mxu0 %v1277
    %1837 = vmatprep.subr.mxu0 0.0
    %1838 = vmatpush1.msra.mxu0 %v1282
    %1839 = vmatprep.subr.mxu0 0.0
    %1840 = vmatpush1.msra.mxu0 %v1287
    %1841 = vmatprep.subr.mxu0 0.0
    %1842 = vmatpush1.msra.mxu0 %v1292
    %1843 = vmatprep.subr.mxu0 0.0
    %1844 = vmatpush1.msra.mxu0 %v1297
    %1845 = vmatprep.subr.mxu0 0.0
    %1846 = vmatpush1.msra.mxu0 %v1302
    %1847 = vmatprep.subr.mxu0 0.0
    %1848 = vmatpush1.msra.mxu0 %v1307
    %1849 = vmatprep.subr.mxu0 0.0
    %1850 = vmatpush1.msra.mxu0 %v1312
    %1851 = vmatprep.subr.mxu0 0.0
    %1852 = vmatpush1.msra.mxu0 %v1317
    %1853 = vmatprep.subr.mxu0 0.0
    %1854 = vmatpush1.msra.mxu0 %v1322
    %1855 = vmatprep.subr.mxu0 0.0
    %1856 = vmatpush1.msra.mxu0 %v1327
    %1857 = vmatprep.subr.mxu0 0.0
    %1858 = vmatpush1.msra.mxu0 %v1332
    %1859 = vmatprep.subr.mxu0 0.0
    %1860 = vmatpush1.msra.mxu0 %v1337
    %1861 = vmatprep.subr.mxu0 0.0
    %1862 = vmatpush1.msra.mxu0 %v1342
    %1863 = vmatprep.subr.mxu0 0.0
    %1864 = vmatpush1.msra.mxu0 %v1347
    %1865 = vmatprep.subr.mxu0 0.0
    %1866 = vmatpush1.msra.mxu0 %v1352
    %1867 = vmatprep.subr.mxu0 0.0
    %1868 = vmatpush1.msra.mxu0 %v1357
    %1869 = vmatprep.subr.mxu0 0.0
    %1870 = vmatpush1.msra.mxu0 %v1362
    %1871 = vmatprep.mubr.f32.mxu0 %v1198
    %1872 = vmatmul.mubr.f32.gmra.mrb[0].mxu0 %v1196
    %v1873 = vpop.f32.mrb[0].mxu0
    %v1874 = vadd.f32 0.0, %v1873
    %v1875 = vpop.f32.mrb[0].mxu0
    %1876 = vdwg.mxu0
    %1877 = vmatprep.subr.mxu0 0.0
    %1878 = vmatpush1.msra.mxu0 %v1367
    %1879 = vmatprep.subr.mxu0 0.0
    %1880 = vmatpush1.msra.mxu0 %v1372
    %1881 = vmatprep.subr.mxu0 0.0
    %1882 = vmatpush1.msra.mxu0 %v1377
    %1883 = vmatprep.subr.mxu0 0.0
    %1884 = vmatpush1.msra.mxu0 %v1382
    %1885 = vmatprep.subr.mxu0 0.0
    %1886 = vmatpush1.msra.mxu0 %v1387
    %1887 = vmatprep.subr.mxu0 0.0
    %1888 = vmatpush1.msra.mxu0 %v1392
    %1889 = vmatprep.subr.mxu0 0.0
    %1890 = vmatpush1.msra.mxu0 %v1397
    %1891 = vmatprep.subr.mxu0 0.0
    %1892 = vmatpush1.msra.mxu0 %v1402
    %1893 = vmatprep.subr.mxu0 0.0
    %1894 = vmatpush1.msra.mxu0 %v1407
    %1895 = vmatprep.subr.mxu0 0.0
    %1896 = vmatpush1.msra.mxu0 %v1412
    %1897 = vmatprep.subr.mxu0 0.0
    %1898 = vmatpush1.msra.mxu0 %v1417
    %1899 = vmatprep.subr.mxu0 0.0
    %1900 = vmatpush1.msra.mxu0 %v1422
    %1901 = vmatprep.subr.mxu0 0.0
    %1902 = vmatpush1.msra.mxu0 %v1427
    %1903 = vmatprep.subr.mxu0 0.0
    %1904 = vmatpush1.msra.mxu0 %v1432
    %1905 = vmatprep.subr.mxu0 0.0
    %1906 = vmatpush1.msra.mxu0 %v1437
    %1907 = vmatprep.subr.mxu0 0.0
    %1908 = vmatpush1.msra.mxu0 %v1442
    %1909 = vmatprep.subr.mxu0 0.0
    %1910 = vmatpush1.msra.mxu0 %v1447
    %1911 = vmatprep.subr.mxu0 0.0
    %1912 = vmatpush1.msra.mxu0 %v1452
    %1913 = vmatprep.subr.mxu0 0.0
    %1914 = vmatpush1.msra.mxu0 %v1457
    %1915 = vmatprep.subr.mxu0 0.0
    %1916 = vmatpush1.msra.mxu0 %v1462
    %1917 = vmatprep.subr.mxu0 0.0
    %1918 = vmatpush1.msra.mxu0 %v1467
    %1919 = vmatprep.subr.mxu0 0.0
    %1920 = vmatpush1.msra.mxu0 %v1472
    %1921 = vmatprep.subr.mxu0 0.0
    %1922 = vmatpush1.msra.mxu0 %v1477
    %1923 = vmatprep.subr.mxu0 0.0
    %1924 = vmatpush1.msra.mxu0 %v1482
    %1925 = vmatprep.subr.mxu0 0.0
    %1926 = vmatpush1.msra.mxu0 %v1487
    %1927 = vmatprep.subr.mxu0 0.0
    %1928 = vmatpush1.msra.mxu0 %v1492
    %1929 = vmatprep.subr.mxu0 0.0
    %1930 = vmatpush1.msra.mxu0 %v1497
    %1931 = vmatprep.subr.mxu0 0.0
    %1932 = vmatpush1.msra.mxu0 %v1502
    %1933 = vmatprep.subr.mxu0 0.0
    %1934 = vmatpush1.msra.mxu0 %v1507
    %1935 = vmatprep.subr.mxu0 0.0
    %1936 = vmatpush1.msra.mxu0 %v1512
    %1937 = vmatprep.subr.mxu0 0.0
    %1938 = vmatpush1.msra.mxu0 %v1517
    %1939 = vmatprep.subr.mxu0 0.0
    %1940 = vmatpush1.msra.mxu0 %v1522
    %1941 = vmatprep.mubr.f32.mxu0 %v1202
    %1942 = vmatmul.mubr.f32.gmra.mrb[0].mxu0 %v1200
    %v1943 = vpop.f32.mrb[0].mxu0
    %v1944 = vadd.f32 %v1874, %v1943
    %v1945 = vpop.f32.mrb[0].mxu0
    %1946 = vdwg.mxu0
    %1947 = vst [vmem:[#allocation10] sm:$0xff] %v1661
    %1948 = vst [vmem:[#allocation10 + $0x8] sm:$0xff] %v1663
    %1949 = vst [vmem:[#allocation10 + $0x10] sm:$0xff] %v1803
    %1950 = vst [vmem:[#allocation10 + $0x18] sm:$0xff] %v1805
    %1951 = vst [vmem:[#allocation10 + $0x20] sm:$0xff] %v1944
    // Predicated region
    $region34: #{tpu_custom_call.1} parent=1 // pred_check
      _
    $region35: #{tpu_custom_call.1} parent=1 // pred_check_branch
      %1953 = sbr.rel (0) target = $region37
    $region36: #{tpu_custom_call.1} parent=1 // pred_region
      %s1955 = ssub.s32 640, 640
      %1956 = vsyncadd [#allocation4], %s1955
      %s1958 = sshll.u32 [#allocation10], 4
      %s1959 = int_to_ptr.vmem [resolvable:$true] %s1958
      %1961 = dma.vmem_to_hbm [thread:$0]  %s1959, 640, %s4, [#allocation4]
    $region37: #{tpu_custom_call.1} parent=1 // pred_fallthru
      _
    // Predicated region
    $region38: #{tpu_custom_call.1} parent=1 // pred_check
      _
    $region39: #{tpu_custom_call.1} parent=1 // pred_check_branch
      %1963 = sbr.rel (0) target = $region41
    $region40: #{tpu_custom_call.1} parent=1 // pred_region
      %1964 = dma.done [#allocation4], 640
    $region41: #{tpu_custom_call.1} parent=1 // pred_fallthru
      _
    %1965 = vsyncpa [#allocation3], 1
    %1966 = vsyncpa [#allocation6], 1
    %1967 = vsyncpa [#allocation9], 1
    %1968 = vsyncpa [#allocation4], 1

</llo_original>
